<compile_context>
chip_gen: v6e
topology: v6e:2x2x1
jax: 0.10.0
libtpu: 0.0.40
codegen_flags: <defaults>
</compile_context>

<pallas_src>
import math
from functools import partial

import jax
import jax.numpy as jnp
from jax.experimental import pallas as pl
from jax.experimental.pallas import tpu as pltpu


def _round_up(a, b):
    return -(-a // b) * b


# ----------------------------------------------------------------------------
# Fused kernel:  out_tile = x_tile + proj[t_tile]
#   - x_ref:    (tn, H)      f32 tile of x
#   - t_ref:    (tn, 1)      int32 tile of indices
#   - proj_ref: (ME_pad, H)  f32, whole projected table, VMEM resident
#   The gather is a one-hot MXU matmul: onehot(t) @ proj  (exact: rows of the
#   one-hot are 0/1, so the f32 accumulation reproduces proj[t] bit-exactly).
# ----------------------------------------------------------------------------
def _rte_fused_kernel(x_ref, t_ref, proj_ref, o_ref):
    tn = x_ref.shape[0]
    me = proj_ref.shape[0]
    t_col = t_ref[...]                                            # (tn, 1) int32
    row_ids = jax.lax.broadcasted_iota(jnp.int32, (tn, me), 1)    # (tn, ME_pad)
    onehot = (row_ids == t_col).astype(jnp.float32)               # exact 0/1
    e = jnp.dot(onehot, proj_ref[...],
                preferred_element_type=jnp.float32)               # (tn, H)
    o_ref[...] = (x_ref[...] + e).astype(o_ref.dtype)


def _pick_tile(n_rows, tile_rows):
    """Token-rows per grid step: multiple of 8, >=2 grid steps when possible."""
    if n_rows <= 8:
        return n_rows                       # single full-extent block
    tn = min(tile_rows, n_rows)
    tn = min(tn, -(-n_rows // 2))           # >= 2 steps (v7x megacore sharding)
    return max(8, (tn // 8) * 8)            # keep sublane dim a multiple of 8


def _vmem_bytes(tn, h, me_pad):
    """Size vmem_limit from actual usage (lane-padded, double-buffered)."""
    lanes = _round_up(h, 128)
    x_blk = tn * lanes * 4                  # x tile (lane-padded in VMEM)
    o_blk = tn * lanes * 4                  # out tile
    t_blk = tn * 128 * 4                    # t tile (padded to 128 lanes)
    p_blk = me_pad * lanes * 4              # projected table
    onehot = tn * _round_up(me_pad, 128) * 4
    need = 2 * (x_blk + o_blk + t_blk + p_blk) + onehot + x_blk + (2 << 20)
    return int(min(max(need, 4 << 20), 32 << 20))   # stay well inside v7x's 64 MiB


# ----------------------------------------------------------------------------
# Forward wrapper
# ----------------------------------------------------------------------------
@partial(jax.jit, static_argnames=("tile_rows",))
def rte_forward(x, t, emb_table, weight, bias, *, tile_rows=2048):
    """x: (N, H) f32, t: (N,) int indices into emb_table (max_encode, H)."""
    N, H = x.shape
    ME = emb_table.shape[0]

    # (1) Project the tiny fixed table once — plain JAX, XLA fuses this fine.
    proj = emb_table @ weight.T + bias                       # (ME, H)
    ME_pad = max(8, _round_up(ME, 128))                      # 240 -> 256 lanes
    if ME_pad != ME:
        proj = jnp.pad(proj, ((0, ME_pad - ME), (0, 0)))
    t2 = t.reshape(N, 1).astype(jnp.int32)

    # (2) Fused gather + residual add (the only HBM-heavy pass).
    tn = _pick_tile(N, tile_rows)
    grid = (pl.cdiv(N, tn),)

    return pl.pallas_call(
        _rte_fused_kernel,
        out_shape=jax.ShapeDtypeStruct((N, H), x.dtype),
        grid_spec=pltpu.PrefetchScalarGridSpec(
            num_scalar_prefetch=0,
            grid=grid,
            in_specs=[
                pl.BlockSpec((tn, H), lambda i: (i, 0)),       # x tile
                pl.BlockSpec((tn, 1), lambda i: (i, 0)),       # t tile
                pl.BlockSpec((ME_pad, H), lambda i: (0, 0)),   # proj (whole, VMEM)
            ],
            out_specs=pl.BlockSpec((tn, H), lambda i: (i, 0)),
        ),
        compiler_params=pltpu.CompilerParams(
            dimension_semantics=("parallel",),                 # megacore-friendly
            vmem_limit_bytes=_vmem_bytes(tn, H, ME_pad)),      # sized, not blanket
        cost_estimate=pl.CostEstimate(
            flops=2 * N * ME_pad * H + N * H,
            transcendentals=0,
            bytes_accessed=(2 * N * H + N + ME_pad * H) * 4),
    )(x, t2, proj)


# ----------------------------------------------------------------------------
# Parameter construction mirroring RTE.__init__
# ----------------------------------------------------------------------------
def make_rte_params(hidden_dim, max_encode, key):
    position = jnp.arange(0.0, max_encode, dtype=jnp.float32)[:, None]        # (M, 1)
    generate_sin = jnp.exp(
        jnp.arange(0, hidden_dim, 2, dtype=jnp.float32)
        * -(math.log(10000.0) / hidden_dim))                                  # (H/2,)
    arg = position * generate_sin                                             # (M, H/2)
    emb = jnp.zeros((max_encode, hidden_dim), dtype=jnp.float32)
    emb = emb.at[:, 0::2].set(jnp.sin(arg) / math.sqrt(hidden_dim))
    emb = emb.at[:, 1::2].set(jnp.cos(arg) / math.sqrt(hidden_dim))

    k_w, k_b = jax.random.split(key)
    bound = 1.0 / math.sqrt(hidden_dim)
    weight = jax.random.uniform(k_w, (hidden_dim, hidden_dim),
                                minval=-bound, maxval=bound, dtype=jnp.float32)
    bias = jax.random.uniform(k_b, (hidden_dim,),
                              minval=-bound, maxval=bound, dtype=jnp.float32)
    return emb, weight, bias


if __name__ == "__main__":
    hidden_dim = 32
    max_encode = 240
    N = 2048  # number of tokens / edges

    key = jax.random.PRNGKey(0)
    k_x, k_t, k_p = jax.random.split(key, 3)

    x = jax.random.normal(k_x, (N, hidden_dim), dtype=jnp.float32)
    t = jax.random.randint(k_t, (N,), minval=0, maxval=max_encode, dtype=jnp.int32)
    emb_table, weight, bias = make_rte_params(hidden_dim, max_encode, k_p)

    # tile_rows=1024 -> an even 2-step parallel grid at this demo size.
    out = rte_forward(x, t, emb_table, weight, bias, tile_rows=1024)
    out = jax.block_until_ready(out)

    # Plain-JAX reference of the PyTorch forward: x + (emb(t) @ W^T + b)
    ref = x + (emb_table[t] @ weight.T + bias)
    assert jnp.allclose(out, ref, atol=1e-5, rtol=1e-5), "mismatch vs reference"

    print("KERNEL_OK")
</pallas_src>

<mosaic_0001>
module attributes {stable_mosaic.version = 11 : i64} {
  func.func @_rte_fused_kernel(%arg0: i32, %arg1: memref<1024x32xf32, #tpu.memory_space<vmem>>, %arg2: memref<1024x1xi32, #tpu.memory_space<vmem>>, %arg3: memref<256x32xf32, #tpu.memory_space<vmem>>, %arg4: memref<1024x32xf32, #tpu.memory_space<vmem>>) attributes {dimension_semantics = [#tpu.dimension_semantics<parallel>], iteration_bounds = array<i64: 2>, scalar_prefetch = 0 : i64, scratch_operands = 0 : i64, tpu.core_type = #tpu.core_type<tc>, window_params = [{transform_indices = @transform_0, window_bounds = array<i64: 1024, 32>}, {transform_indices = @transform_1, window_bounds = array<i64: 1024, 1>}, {pipeline_mode = #tpu.pipeline_mode<synchronous>, transform_indices = @transform_2, window_bounds = array<i64: 256, 32>}, {transform_indices = @transform_3, window_bounds = array<i64: 1024, 32>}]} {
    %c0 = arith.constant 0 : index
    %c0_0 = arith.constant 0 : index
    %0 = vector.load %arg2[%c0, %c0_0] : memref<1024x1xi32, #tpu.memory_space<vmem>>, vector<1024x1xi32>
    %1 = tpu.iota {dimensions = array<i32: 1>} : vector<1024x256xi32>
    %2 = vector.broadcast %0 : vector<1024x1xi32> to vector<1024x256xi32>
    %3 = arith.cmpi eq, %1, %2 : vector<1024x256xi32>
    %4 = arith.extui %3 : vector<1024x256xi1> to vector<1024x256xi32>
    %5 = arith.sitofp %4 : vector<1024x256xi32> to vector<1024x256xf32>
    %c0_1 = arith.constant 0 : index
    %c0_2 = arith.constant 0 : index
    %6 = vector.load %arg3[%c0_1, %c0_2] : memref<256x32xf32, #tpu.memory_space<vmem>>, vector<256x32xf32>
    %cst = arith.constant dense<0.000000e+00> : vector<1024x32xf32>
    %7 = tpu.matmul %5, %6, %cst {dimension_numbers = #tpu.dot_dimension_numbers<[1], [0], [0], [1], [0, 0, 1, 1], [], []>} : vector<1024x256xf32>, vector<256x32xf32>, vector<1024x32xf32> -> vector<1024x32xf32>
    %c0_3 = arith.constant 0 : index
    %c0_4 = arith.constant 0 : index
    %8 = vector.load %arg1[%c0_3, %c0_4] : memref<1024x32xf32, #tpu.memory_space<vmem>>, vector<1024x32xf32>
    %9 = arith.addf %8, %7 : vector<1024x32xf32>
    %c0_5 = arith.constant 0 : index
    %c0_6 = arith.constant 0 : index
    %10 = vector.load %arg4[%c0_5, %c0_6] : memref<1024x32xf32, #tpu.memory_space<vmem>>, vector<1024x32xf32>
    tpu.vector_store %arg4[%c0_5, %c0_6], %9 {strides = array<i32>} : memref<1024x32xf32, #tpu.memory_space<vmem>>, vector<1024x32xf32>,
    return
  }
  func.func @transform_0(%arg0: i32) -> (i32, i32) {
    %c0_i32 = arith.constant 0 : i32
    %c0_i32_0 = arith.constant 0 : i32
    return %arg0, %c0_i32 : i32, i32
  }
  func.func @transform_1(%arg0: i32) -> (i32, i32) {
    %c0_i32 = arith.constant 0 : i32
    %c0_i32_0 = arith.constant 0 : i32
    return %arg0, %c0_i32 : i32, i32
  }
  func.func @transform_2(%arg0: i32) -> (i32, i32) {
    %c0_i32 = arith.constant 0 : i32
    %c0_i32_0 = arith.constant 0 : i32
    %c0_i32_1 = arith.constant 0 : i32
    return %c0_i32, %c0_i32_0 : i32, i32
  }
  func.func @transform_3(%arg0: i32) -> (i32, i32) {
    %c0_i32 = arith.constant 0 : i32
    %c0_i32_0 = arith.constant 0 : i32
    return %arg0, %c0_i32 : i32, i32
  }
}

</mosaic_0001>

<llo_original>
// kernel: rte_forward.1
$region0: #{rte_forward.1}
  #allocation0 [shape = 'u32[]', space=smem, size = 0x4, offset = 0x4, fixed_abs, tag = 'smem constant byte address 0x4 - core index']
  #allocation1 [shape = 'u32[144,128]{1,0:T(1,128)}', space=vmem, size = 0x12000, scoped, tag = 'internal scratch']
  %s0 = inlined_call_operand.vmem [shape: f32[2048,32], index: 0, kind: input, shape index: {}]
  %s1 = inlined_call_operand.vmem [shape: s32[2048,1], index: 1, kind: input, shape index: {}]
  %s2 = inlined_call_operand.vmem [shape: f32[256,32], index: 2, kind: input, shape index: {}]
  %s3 = inlined_call_operand.vmem [shape: f32[2048,32], index: 3, kind: output, shape index: {}]
  %s4 = sld [smem:[#allocation0]]
  $region45: #{rte_forward.1} parent=0
    _
  %s6 = ssub.s32 1, %s4
  %s7 = scalar_select 0, %s6, %s4
  loop: start=0, step=1, limit=4
  $region2: #{rte_forward.1} parent=0 // loop_pre_header
    _
  $region3: #{rte_forward.1} parent=0 // loop_header
    %s9 = sphi 0, %s13
    %p10 = scmp.ge.s32.totalorder %s9, 4
    %s19 = sphi 0, %s21
    %s22 = sphi 0, %s19
    %s23 = sphi 0, %s22
    %s39 = sphi 0, %s23
    %s45 = sphi 0, %s47
    %s48 = sphi 0, %s45
    %s49 = sphi 0, %s48
    %s65 = sphi 0, %s49
    %s69 = sphi 0, %s69
    %s71 = sphi 0, %s69
    %s72 = sphi 0, %s71
    %s86 = sphi 0, %s72
    %s92 = sphi 0, %s94
    %s95 = sphi 0, %s92
    %s96 = sphi 0, %s95
    %s112 = sphi 0, %s96
  $region4: #{rte_forward.1} parent=0 // loop_header_branch
    %12 = sbr.rel (%p10) target = $region8
  $region5: #{rte_forward.1} parent=0 // loop_body
    %s14 = ssub.s32 %s9, 1
    %s15 = ssub.s32 %s9, 2
    %s16 = sadd.s32 %s9, 1
    %s17 = ssub.s32 %s9, %s16
    %p18 = scmp.eq.s32.totalorder %s17, 0
    %s20 = sadd.s32 %s19, 1
    %s21 = scalar_select %p18, %s19, %s20
    %p24 = pneg %p18
    %p25 = scmp.eq.s32.totalorder %s9, 1
    %p26 = por %p24, %p25
    %p27 = scmp.ne.s32.totalorder %s19, %s22
    %p28 = scmp.eq.s32.totalorder %s9, 0
    %p29 = por %p27, %p28
    %p30 = scmp.ne.s32.totalorder %s19, %s22
    %p31 = scmp.eq.s32.totalorder %s14, 1
    %p32 = por %p30, %p31
    %p33 = scmp.ne.s32.totalorder %s22, %s23
    %p34 = scmp.eq.s32.totalorder %s14, 0
    %p35 = por %p33, %p34
    %p36 = scmp.ne.s32.totalorder %s22, %s23
    %p37 = scmp.eq.s32.totalorder %s15, 1
    %p38 = por %p36, %p37
    %p40 = scmp.ne.s32.totalorder %s23, %s39
    %p41 = scmp.eq.s32.totalorder %s15, 0
    %p42 = por %p40, %p41
    %s43 = ssub.s32 %s9, %s16
    %p44 = scmp.eq.s32.totalorder %s43, 0
    %s46 = sadd.s32 %s45, 1
    %s47 = scalar_select %p44, %s45, %s46
    %p50 = pneg %p44
    %p51 = scmp.eq.s32.totalorder %s9, 1
    %p52 = por %p50, %p51
    %p53 = scmp.ne.s32.totalorder %s45, %s48
    %p54 = scmp.eq.s32.totalorder %s9, 0
    %p55 = por %p53, %p54
    %p56 = scmp.ne.s32.totalorder %s45, %s48
    %p57 = scmp.eq.s32.totalorder %s14, 1
    %p58 = por %p56, %p57
    %p59 = scmp.ne.s32.totalorder %s48, %s49
    %p60 = scmp.eq.s32.totalorder %s14, 0
    %p61 = por %p59, %p60
    %p62 = scmp.ne.s32.totalorder %s48, %s49
    %p63 = scmp.eq.s32.totalorder %s15, 1
    %p64 = por %p62, %p63
    %p66 = scmp.ne.s32.totalorder %s49, %s65
    %p67 = scmp.eq.s32.totalorder %s15, 0
    %p68 = por %p66, %p67
    %s70 = sadd.s32 %s69, 1
    %p73 = scmp.eq.s32.totalorder %s9, 1
    %p74 = scmp.ne.s32.totalorder %s69, %s71
    %p75 = scmp.eq.s32.totalorder %s9, 0
    %p76 = por %p74, %p75
    %p77 = scmp.ne.s32.totalorder %s69, %s71
    %p78 = scmp.eq.s32.totalorder %s14, 1
    %p79 = por %p77, %p78
    %p80 = scmp.ne.s32.totalorder %s71, %s72
    %p81 = scmp.eq.s32.totalorder %s14, 0
    %p82 = por %p80, %p81
    %p83 = scmp.ne.s32.totalorder %s71, %s72
    %p84 = scmp.eq.s32.totalorder %s15, 1
    %p85 = por %p83, %p84
    %p87 = scmp.ne.s32.totalorder %s72, %s86
    %p88 = scmp.eq.s32.totalorder %s15, 0
    %p89 = por %p87, %p88
    %s90 = ssub.s32 %s9, %s16
    %p91 = scmp.eq.s32.totalorder %s90, 0
    %s93 = sadd.s32 %s92, 1
    %s94 = scalar_select %p91, %s92, %s93
    %p97 = pneg %p91
    %p98 = scmp.eq.s32.totalorder %s9, 1
    %p99 = por %p97, %p98
    %p100 = scmp.ne.s32.totalorder %s92, %s95
    %p101 = scmp.eq.s32.totalorder %s9, 0
    %p102 = por %p100, %p101
    %p103 = scmp.ne.s32.totalorder %s92, %s95
    %p104 = scmp.eq.s32.totalorder %s14, 1
    %p105 = por %p103, %p104
    %p106 = scmp.ne.s32.totalorder %s95, %s96
    %p107 = scmp.eq.s32.totalorder %s14, 0
    %p108 = por %p106, %p107
    %p109 = scmp.ne.s32.totalorder %s95, %s96
    %p110 = scmp.eq.s32.totalorder %s15, 1
    %p111 = por %p109, %p110
    %p113 = scmp.ne.s32.totalorder %s96, %s112
    %p114 = scmp.eq.s32.totalorder %s15, 0
    %p115 = por %p113, %p114
    %p116 = scmp.le.s32.totalorder 1, %s9
    %p117 = scmp.lt.s32.totalorder %s9, 3
    %p118 = pnand %p116, %p117
    %p119 = pneg %p118
    // Predicated region
    $region9: #{rte_forward.1} parent=5 // pred_check
      _
    $region10: #{rte_forward.1} parent=5 // pred_check_branch
      %121 = sbr.rel (%p118) target = $region12
    $region11: #{rte_forward.1} parent=5 // pred_region
      %s122 = ssub.s32 %s9, 1
      // Predicated region
      $region13: #{rte_forward.1} parent=11 // pred_check
        %p123 = pneg %p82
      $region14: #{rte_forward.1} parent=11 // pred_check_branch
        %125 = sbr.rel (%p123) target = $region16
      $region15: #{rte_forward.1} parent=11 // pred_region
        _
      $region16: #{rte_forward.1} parent=11 // pred_fallthru
        _
    $region12: #{rte_forward.1} parent=5 // pred_fallthru
      _
    %p126 = scmp.lt.s32.totalorder %s9, 2
    // Predicated region
    $region17: #{rte_forward.1} parent=5 // pred_check
      %p127 = pneg %p126
    $region18: #{rte_forward.1} parent=5 // pred_check_branch
      %129 = sbr.rel (%p127) target = $region20
    $region19: #{rte_forward.1} parent=5 // pred_region
      // Predicated region
      $region21: #{rte_forward.1} parent=19 // pred_check
        %p130 = pneg %p29
      $region22: #{rte_forward.1} parent=19 // pred_check_branch
        %132 = sbr.rel (%p130) target = $region24
      $region23: #{rte_forward.1} parent=19 // pred_region
        %s133 = smul.u32 128, %s9
        %p134 = scmp.lt.s32.totalorder %s133, 255
        %s135 = scalar_select %p134, %s133, 255
        %s136 = smul.addr %s135, 8
        %s137 = scalar_lea.vmem %s0, %s136
        %s138 = smul.u32 128, %s9
      $region24: #{rte_forward.1} parent=19 // pred_fallthru
        _
      // Predicated region
      $region25: #{rte_forward.1} parent=19 // pred_check
        %p139 = pneg %p55
      $region26: #{rte_forward.1} parent=19 // pred_check_branch
        %141 = sbr.rel (%p139) target = $region28
      $region27: #{rte_forward.1} parent=19 // pred_region
        %s142 = smul.u32 128, %s9
        %p143 = scmp.lt.s32.totalorder %s142, 255
        %s144 = scalar_select %p143, %s142, 255
        %s145 = smul.addr %s144, 8
        %s146 = scalar_lea.vmem %s1, %s145
        %s147 = smul.u32 128, %s9
      $region28: #{rte_forward.1} parent=19 // pred_fallthru
        _
    $region20: #{rte_forward.1} parent=5 // pred_fallthru
      _
    %p148 = scmp.le.s32.totalorder 1, %s9
    %p149 = scmp.lt.s32.totalorder %s9, 3
    %p150 = pnand %p148, %p149
    %p151 = pneg %p150
    // Predicated region
    $region29: #{rte_forward.1} parent=5 // pred_check
      _
    $region30: #{rte_forward.1} parent=5 // pred_check_branch
      %153 = sbr.rel (%p150) target = $region32
    $region31: #{rte_forward.1} parent=5 // pred_region
      %s154 = ssub.s32 %s9, 1
      %s155 = smul.u32 128, %s14
      %p156 = scmp.lt.s32.totalorder %s155, 255
      %s157 = scalar_select %p156, %s155, 255
      %s158 = smul.addr %s157, 8
      %s159 = scalar_lea.vmem %s0, %s158
      %p160 = pneg %p35
      %p161 = pneg %p32
      %s162 = smul.u32 128, %s14
      %p163 = scmp.lt.s32.totalorder %s162, 255
      %s164 = scalar_select %p163, %s162, 255
      %s165 = smul.addr %s164, 8
      %s166 = scalar_lea.vmem %s1, %s165
      %p167 = pneg %p61
      %p168 = pneg %p58
      %p169 = pneg %p82
      %p170 = pneg %p79
      %p171 = pneg %p108
      %p172 = pneg %p105
      %s173 = smul.u32 128, %s14
      %p174 = scmp.lt.s32.totalorder %s173, 255
      %s175 = scalar_select %p174, %s173, 255
      %s176 = smul.addr %s175, 8
      %s177 = scalar_lea.vmem %s3, %s176
      %s178 = smul.u32 128, %s14
      %p179 = scmp.lt.s32.totalorder %s178, 255
      %s180 = scalar_select %p179, %s178, 255
      %s181 = smul.addr %s180, 8
      %s182 = scalar_lea.vmem %s0, %s181
      %s183 = smul.u32 128, %s14
      %s184 = smul.u32 128, %s14
      %p185 = scmp.lt.s32.totalorder %s184, 255
      %s186 = scalar_select %p185, %s184, 255
      %s187 = smul.addr %s186, 8
      %s188 = scalar_lea.vmem %s1, %s187
      %s189 = smul.u32 128, %s14
      %s190 = smul.u32 128, %s14
      %p191 = scmp.lt.s32.totalorder %s190, 255
      %s192 = scalar_select %p191, %s190, 255
      %s193 = smul.addr %s192, 8
      %s194 = scalar_lea.vmem %s3, %s193
      %s195 = smul.u32 128, %s14
      %v196 = vld [vmem:[%s188] sm:$0xff]
      %v197 = vld [vmem:[%s188 + $0x8] sm:$0xff]
      %v198 = vld [vmem:[%s188 + $0x10] sm:$0xff]
      %v199 = vld [vmem:[%s188 + $0x18] sm:$0xff]
      %v200 = vld [vmem:[%s188 + $0x20] sm:$0xff]
      %v201 = vld [vmem:[%s188 + $0x28] sm:$0xff]
      %v202 = vld [vmem:[%s188 + $0x30] sm:$0xff]
      %v203 = vld [vmem:[%s188 + $0x38] sm:$0xff]
      %v204 = vld [vmem:[%s188 + $0x40] sm:$0xff]
      %v205 = vld [vmem:[%s188 + $0x48] sm:$0xff]
      %v206 = vld [vmem:[%s188 + $0x50] sm:$0xff]
      %v207 = vld [vmem:[%s188 + $0x58] sm:$0xff]
      %v208 = vld [vmem:[%s188 + $0x60] sm:$0xff]
      %v209 = vld [vmem:[%s188 + $0x68] sm:$0xff]
      %v210 = vld [vmem:[%s188 + $0x70] sm:$0xff]
      %v211 = vld [vmem:[%s188 + $0x78] sm:$0xff]
      %v212 = vld [vmem:[%s188 + $0x80] sm:$0xff]
      %v213 = vld [vmem:[%s188 + $0x88] sm:$0xff]
      %v214 = vld [vmem:[%s188 + $0x90] sm:$0xff]
      %v215 = vld [vmem:[%s188 + $0x98] sm:$0xff]
      %v216 = vld [vmem:[%s188 + $0xa0] sm:$0xff]
      %v217 = vld [vmem:[%s188 + $0xa8] sm:$0xff]
      %v218 = vld [vmem:[%s188 + $0xb0] sm:$0xff]
      %v219 = vld [vmem:[%s188 + $0xb8] sm:$0xff]
      %v220 = vld [vmem:[%s188 + $0xc0] sm:$0xff]
      %v221 = vld [vmem:[%s188 + $0xc8] sm:$0xff]
      %v222 = vld [vmem:[%s188 + $0xd0] sm:$0xff]
      %v223 = vld [vmem:[%s188 + $0xd8] sm:$0xff]
      %v224 = vld [vmem:[%s188 + $0xe0] sm:$0xff]
      %v225 = vld [vmem:[%s188 + $0xe8] sm:$0xff]
      %v226 = vld [vmem:[%s188 + $0xf0] sm:$0xff]
      %v227 = vld [vmem:[%s188 + $0xf8] sm:$0xff]
      %v228 = vld [vmem:[%s188 + $0x100] sm:$0xff]
      %v229 = vld [vmem:[%s188 + $0x108] sm:$0xff]
      %v230 = vld [vmem:[%s188 + $0x110] sm:$0xff]
      %v231 = vld [vmem:[%s188 + $0x118] sm:$0xff]
      %v232 = vld [vmem:[%s188 + $0x120] sm:$0xff]
      %v233 = vld [vmem:[%s188 + $0x128] sm:$0xff]
      %v234 = vld [vmem:[%s188 + $0x130] sm:$0xff]
      %v235 = vld [vmem:[%s188 + $0x138] sm:$0xff]
      %v236 = vld [vmem:[%s188 + $0x140] sm:$0xff]
      %v237 = vld [vmem:[%s188 + $0x148] sm:$0xff]
      %v238 = vld [vmem:[%s188 + $0x150] sm:$0xff]
      %v239 = vld [vmem:[%s188 + $0x158] sm:$0xff]
      %v240 = vld [vmem:[%s188 + $0x160] sm:$0xff]
      %v241 = vld [vmem:[%s188 + $0x168] sm:$0xff]
      %v242 = vld [vmem:[%s188 + $0x170] sm:$0xff]
      %v243 = vld [vmem:[%s188 + $0x178] sm:$0xff]
      %v244 = vld [vmem:[%s188 + $0x180] sm:$0xff]
      %v245 = vld [vmem:[%s188 + $0x188] sm:$0xff]
      %v246 = vld [vmem:[%s188 + $0x190] sm:$0xff]
      %v247 = vld [vmem:[%s188 + $0x198] sm:$0xff]
      %v248 = vld [vmem:[%s188 + $0x1a0] sm:$0xff]
      %v249 = vld [vmem:[%s188 + $0x1a8] sm:$0xff]
      %v250 = vld [vmem:[%s188 + $0x1b0] sm:$0xff]
      %v251 = vld [vmem:[%s188 + $0x1b8] sm:$0xff]
      %v252 = vld [vmem:[%s188 + $0x1c0] sm:$0xff]
      %v253 = vld [vmem:[%s188 + $0x1c8] sm:$0xff]
      %v254 = vld [vmem:[%s188 + $0x1d0] sm:$0xff]
      %v255 = vld [vmem:[%s188 + $0x1d8] sm:$0xff]
      %v256 = vld [vmem:[%s188 + $0x1e0] sm:$0xff]
      %v257 = vld [vmem:[%s188 + $0x1e8] sm:$0xff]
      %v258 = vld [vmem:[%s188 + $0x1f0] sm:$0xff]
      %v259 = vld [vmem:[%s188 + $0x1f8] sm:$0xff]
      %v260 = vld [vmem:[%s188 + $0x200] sm:$0xff]
      %v261 = vld [vmem:[%s188 + $0x208] sm:$0xff]
      %v262 = vld [vmem:[%s188 + $0x210] sm:$0xff]
      %v263 = vld [vmem:[%s188 + $0x218] sm:$0xff]
      %v264 = vld [vmem:[%s188 + $0x220] sm:$0xff]
      %v265 = vld [vmem:[%s188 + $0x228] sm:$0xff]
      %v266 = vld [vmem:[%s188 + $0x230] sm:$0xff]
      %v267 = vld [vmem:[%s188 + $0x238] sm:$0xff]
      %v268 = vld [vmem:[%s188 + $0x240] sm:$0xff]
      %v269 = vld [vmem:[%s188 + $0x248] sm:$0xff]
      %v270 = vld [vmem:[%s188 + $0x250] sm:$0xff]
      %v271 = vld [vmem:[%s188 + $0x258] sm:$0xff]
      %v272 = vld [vmem:[%s188 + $0x260] sm:$0xff]
      %v273 = vld [vmem:[%s188 + $0x268] sm:$0xff]
      %v274 = vld [vmem:[%s188 + $0x270] sm:$0xff]
      %v275 = vld [vmem:[%s188 + $0x278] sm:$0xff]
      %v276 = vld [vmem:[%s188 + $0x280] sm:$0xff]
      %v277 = vld [vmem:[%s188 + $0x288] sm:$0xff]
      %v278 = vld [vmem:[%s188 + $0x290] sm:$0xff]
      %v279 = vld [vmem:[%s188 + $0x298] sm:$0xff]
      %v280 = vld [vmem:[%s188 + $0x2a0] sm:$0xff]
      %v281 = vld [vmem:[%s188 + $0x2a8] sm:$0xff]
      %v282 = vld [vmem:[%s188 + $0x2b0] sm:$0xff]
      %v283 = vld [vmem:[%s188 + $0x2b8] sm:$0xff]
      %v284 = vld [vmem:[%s188 + $0x2c0] sm:$0xff]
      %v285 = vld [vmem:[%s188 + $0x2c8] sm:$0xff]
      %v286 = vld [vmem:[%s188 + $0x2d0] sm:$0xff]
      %v287 = vld [vmem:[%s188 + $0x2d8] sm:$0xff]
      %v288 = vld [vmem:[%s188 + $0x2e0] sm:$0xff]
      %v289 = vld [vmem:[%s188 + $0x2e8] sm:$0xff]
      %v290 = vld [vmem:[%s188 + $0x2f0] sm:$0xff]
      %v291 = vld [vmem:[%s188 + $0x2f8] sm:$0xff]
      %v292 = vld [vmem:[%s188 + $0x300] sm:$0xff]
      %v293 = vld [vmem:[%s188 + $0x308] sm:$0xff]
      %v294 = vld [vmem:[%s188 + $0x310] sm:$0xff]
      %v295 = vld [vmem:[%s188 + $0x318] sm:$0xff]
      %v296 = vld [vmem:[%s188 + $0x320] sm:$0xff]
      %v297 = vld [vmem:[%s188 + $0x328] sm:$0xff]
      %v298 = vld [vmem:[%s188 + $0x330] sm:$0xff]
      %v299 = vld [vmem:[%s188 + $0x338] sm:$0xff]
      %v300 = vld [vmem:[%s188 + $0x340] sm:$0xff]
      %v301 = vld [vmem:[%s188 + $0x348] sm:$0xff]
      %v302 = vld [vmem:[%s188 + $0x350] sm:$0xff]
      %v303 = vld [vmem:[%s188 + $0x358] sm:$0xff]
      %v304 = vld [vmem:[%s188 + $0x360] sm:$0xff]
      %v305 = vld [vmem:[%s188 + $0x368] sm:$0xff]
      %v306 = vld [vmem:[%s188 + $0x370] sm:$0xff]
      %v307 = vld [vmem:[%s188 + $0x378] sm:$0xff]
      %v308 = vld [vmem:[%s188 + $0x380] sm:$0xff]
      %v309 = vld [vmem:[%s188 + $0x388] sm:$0xff]
      %v310 = vld [vmem:[%s188 + $0x390] sm:$0xff]
      %v311 = vld [vmem:[%s188 + $0x398] sm:$0xff]
      %v312 = vld [vmem:[%s188 + $0x3a0] sm:$0xff]
      %v313 = vld [vmem:[%s188 + $0x3a8] sm:$0xff]
      %v314 = vld [vmem:[%s188 + $0x3b0] sm:$0xff]
      %v315 = vld [vmem:[%s188 + $0x3b8] sm:$0xff]
      %v316 = vld [vmem:[%s188 + $0x3c0] sm:$0xff]
      %v317 = vld [vmem:[%s188 + $0x3c8] sm:$0xff]
      %v318 = vld [vmem:[%s188 + $0x3d0] sm:$0xff]
      %v319 = vld [vmem:[%s188 + $0x3d8] sm:$0xff]
      %v320 = vld [vmem:[%s188 + $0x3e0] sm:$0xff]
      %v321 = vld [vmem:[%s188 + $0x3e8] sm:$0xff]
      %v322 = vld [vmem:[%s188 + $0x3f0] sm:$0xff]
      %v323 = vld [vmem:[%s188 + $0x3f8] sm:$0xff]
      %v324 = vlaneseq
      %v325 = vand.u32 %v324, 127
      %v326 = vadd.s32 %v325, 128
      %327 = vset.pattern.permute.xlu0 0
      %328 = vperm.xlu0 %327, %v196
      %v329 = vpop.permute.xlu0 %328
      %330 = vset.pattern.permute.xlu0 0
      %331 = vperm.xlu0 %330, %v197
      %v332 = vpop.permute.xlu0 %331
      %333 = vset.pattern.permute.xlu0 0
      %334 = vperm.xlu0 %333, %v198
      %v335 = vpop.permute.xlu0 %334
      %336 = vset.pattern.permute.xlu0 0
      %337 = vperm.xlu0 %336, %v199
      %v338 = vpop.permute.xlu0 %337
      %339 = vset.pattern.permute.xlu0 0
      %340 = vperm.xlu0 %339, %v200
      %v341 = vpop.permute.xlu0 %340
      %342 = vset.pattern.permute.xlu0 0
      %343 = vperm.xlu0 %342, %v201
      %v344 = vpop.permute.xlu0 %343
      %345 = vset.pattern.permute.xlu0 0
      %346 = vperm.xlu0 %345, %v202
      %v347 = vpop.permute.xlu0 %346
      %348 = vset.pattern.permute.xlu0 0
      %349 = vperm.xlu0 %348, %v203
      %v350 = vpop.permute.xlu0 %349
      %351 = vset.pattern.permute.xlu0 0
      %352 = vperm.xlu0 %351, %v204
      %v353 = vpop.permute.xlu0 %352
      %354 = vset.pattern.permute.xlu0 0
      %355 = vperm.xlu0 %354, %v205
      %v356 = vpop.permute.xlu0 %355
      %357 = vset.pattern.permute.xlu0 0
      %358 = vperm.xlu0 %357, %v206
      %v359 = vpop.permute.xlu0 %358
      %360 = vset.pattern.permute.xlu0 0
      %361 = vperm.xlu0 %360, %v207
      %v362 = vpop.permute.xlu0 %361
      %363 = vset.pattern.permute.xlu0 0
      %364 = vperm.xlu0 %363, %v208
      %v365 = vpop.permute.xlu0 %364
      %366 = vset.pattern.permute.xlu0 0
      %367 = vperm.xlu0 %366, %v209
      %v368 = vpop.permute.xlu0 %367
      %369 = vset.pattern.permute.xlu0 0
      %370 = vperm.xlu0 %369, %v210
      %v371 = vpop.permute.xlu0 %370
      %372 = vset.pattern.permute.xlu0 0
      %373 = vperm.xlu0 %372, %v211
      %v374 = vpop.permute.xlu0 %373
      %375 = vset.pattern.permute.xlu0 0
      %376 = vperm.xlu0 %375, %v212
      %v377 = vpop.permute.xlu0 %376
      %378 = vset.pattern.permute.xlu0 0
      %379 = vperm.xlu0 %378, %v213
      %v380 = vpop.permute.xlu0 %379
      %381 = vset.pattern.permute.xlu0 0
      %382 = vperm.xlu0 %381, %v214
      %v383 = vpop.permute.xlu0 %382
      %384 = vset.pattern.permute.xlu0 0
      %385 = vperm.xlu0 %384, %v215
      %v386 = vpop.permute.xlu0 %385
      %387 = vset.pattern.permute.xlu0 0
      %388 = vperm.xlu0 %387, %v216
      %v389 = vpop.permute.xlu0 %388
      %390 = vset.pattern.permute.xlu0 0
      %391 = vperm.xlu0 %390, %v217
      %v392 = vpop.permute.xlu0 %391
      %393 = vset.pattern.permute.xlu0 0
      %394 = vperm.xlu0 %393, %v218
      %v395 = vpop.permute.xlu0 %394
      %396 = vset.pattern.permute.xlu0 0
      %397 = vperm.xlu0 %396, %v219
      %v398 = vpop.permute.xlu0 %397
      %399 = vset.pattern.permute.xlu0 0
      %400 = vperm.xlu0 %399, %v220
      %v401 = vpop.permute.xlu0 %400
      %402 = vset.pattern.permute.xlu0 0
      %403 = vperm.xlu0 %402, %v221
      %v404 = vpop.permute.xlu0 %403
      %405 = vset.pattern.permute.xlu0 0
      %406 = vperm.xlu0 %405, %v222
      %v407 = vpop.permute.xlu0 %406
      %408 = vset.pattern.permute.xlu0 0
      %409 = vperm.xlu0 %408, %v223
      %v410 = vpop.permute.xlu0 %409
      %411 = vset.pattern.permute.xlu0 0
      %412 = vperm.xlu0 %411, %v224
      %v413 = vpop.permute.xlu0 %412
      %414 = vset.pattern.permute.xlu0 0
      %415 = vperm.xlu0 %414, %v225
      %v416 = vpop.permute.xlu0 %415
      %417 = vset.pattern.permute.xlu0 0
      %418 = vperm.xlu0 %417, %v226
      %v419 = vpop.permute.xlu0 %418
      %420 = vset.pattern.permute.xlu0 0
      %421 = vperm.xlu0 %420, %v227
      %v422 = vpop.permute.xlu0 %421
      %423 = vset.pattern.permute.xlu0 0
      %424 = vperm.xlu0 %423, %v228
      %v425 = vpop.permute.xlu0 %424
      %426 = vset.pattern.permute.xlu0 0
      %427 = vperm.xlu0 %426, %v229
      %v428 = vpop.permute.xlu0 %427
      %429 = vset.pattern.permute.xlu0 0
      %430 = vperm.xlu0 %429, %v230
      %v431 = vpop.permute.xlu0 %430
      %432 = vset.pattern.permute.xlu0 0
      %433 = vperm.xlu0 %432, %v231
      %v434 = vpop.permute.xlu0 %433
      %435 = vset.pattern.permute.xlu0 0
      %436 = vperm.xlu0 %435, %v232
      %v437 = vpop.permute.xlu0 %436
      %438 = vset.pattern.permute.xlu0 0
      %439 = vperm.xlu0 %438, %v233
      %v440 = vpop.permute.xlu0 %439
      %441 = vset.pattern.permute.xlu0 0
      %442 = vperm.xlu0 %441, %v234
      %v443 = vpop.permute.xlu0 %442
      %444 = vset.pattern.permute.xlu0 0
      %445 = vperm.xlu0 %444, %v235
      %v446 = vpop.permute.xlu0 %445
      %447 = vset.pattern.permute.xlu0 0
      %448 = vperm.xlu0 %447, %v236
      %v449 = vpop.permute.xlu0 %448
      %450 = vset.pattern.permute.xlu0 0
      %451 = vperm.xlu0 %450, %v237
      %v452 = vpop.permute.xlu0 %451
      %453 = vset.pattern.permute.xlu0 0
      %454 = vperm.xlu0 %453, %v238
      %v455 = vpop.permute.xlu0 %454
      %456 = vset.pattern.permute.xlu0 0
      %457 = vperm.xlu0 %456, %v239
      %v458 = vpop.permute.xlu0 %457
      %459 = vset.pattern.permute.xlu0 0
      %460 = vperm.xlu0 %459, %v240
      %v461 = vpop.permute.xlu0 %460
      %462 = vset.pattern.permute.xlu0 0
      %463 = vperm.xlu0 %462, %v241
      %v464 = vpop.permute.xlu0 %463
      %465 = vset.pattern.permute.xlu0 0
      %466 = vperm.xlu0 %465, %v242
      %v467 = vpop.permute.xlu0 %466
      %468 = vset.pattern.permute.xlu0 0
      %469 = vperm.xlu0 %468, %v243
      %v470 = vpop.permute.xlu0 %469
      %471 = vset.pattern.permute.xlu0 0
      %472 = vperm.xlu0 %471, %v244
      %v473 = vpop.permute.xlu0 %472
      %474 = vset.pattern.permute.xlu0 0
      %475 = vperm.xlu0 %474, %v245
      %v476 = vpop.permute.xlu0 %475
      %477 = vset.pattern.permute.xlu0 0
      %478 = vperm.xlu0 %477, %v246
      %v479 = vpop.permute.xlu0 %478
      %480 = vset.pattern.permute.xlu0 0
      %481 = vperm.xlu0 %480, %v247
      %v482 = vpop.permute.xlu0 %481
      %483 = vset.pattern.permute.xlu0 0
      %484 = vperm.xlu0 %483, %v248
      %v485 = vpop.permute.xlu0 %484
      %486 = vset.pattern.permute.xlu0 0
      %487 = vperm.xlu0 %486, %v249
      %v488 = vpop.permute.xlu0 %487
      %489 = vset.pattern.permute.xlu0 0
      %490 = vperm.xlu0 %489, %v250
      %v491 = vpop.permute.xlu0 %490
      %492 = vset.pattern.permute.xlu0 0
      %493 = vperm.xlu0 %492, %v251
      %v494 = vpop.permute.xlu0 %493
      %495 = vset.pattern.permute.xlu0 0
      %496 = vperm.xlu0 %495, %v252
      %v497 = vpop.permute.xlu0 %496
      %498 = vset.pattern.permute.xlu0 0
      %499 = vperm.xlu0 %498, %v253
      %v500 = vpop.permute.xlu0 %499
      %501 = vset.pattern.permute.xlu0 0
      %502 = vperm.xlu0 %501, %v254
      %v503 = vpop.permute.xlu0 %502
      %504 = vset.pattern.permute.xlu0 0
      %505 = vperm.xlu0 %504, %v255
      %v506 = vpop.permute.xlu0 %505
      %507 = vset.pattern.permute.xlu0 0
      %508 = vperm.xlu0 %507, %v256
      %v509 = vpop.permute.xlu0 %508
      %510 = vset.pattern.permute.xlu0 0
      %511 = vperm.xlu0 %510, %v257
      %v512 = vpop.permute.xlu0 %511
      %513 = vset.pattern.permute.xlu0 0
      %514 = vperm.xlu0 %513, %v258
      %v515 = vpop.permute.xlu0 %514
      %516 = vset.pattern.permute.xlu0 0
      %517 = vperm.xlu0 %516, %v259
      %v518 = vpop.permute.xlu0 %517
      %519 = vset.pattern.permute.xlu0 0
      %520 = vperm.xlu0 %519, %v260
      %v521 = vpop.permute.xlu0 %520
      %522 = vset.pattern.permute.xlu0 0
      %523 = vperm.xlu0 %522, %v261
      %v524 = vpop.permute.xlu0 %523
      %525 = vset.pattern.permute.xlu0 0
      %526 = vperm.xlu0 %525, %v262
      %v527 = vpop.permute.xlu0 %526
      %528 = vset.pattern.permute.xlu0 0
      %529 = vperm.xlu0 %528, %v263
      %v530 = vpop.permute.xlu0 %529
      %531 = vset.pattern.permute.xlu0 0
      %532 = vperm.xlu0 %531, %v264
      %v533 = vpop.permute.xlu0 %532
      %534 = vset.pattern.permute.xlu0 0
      %535 = vperm.xlu0 %534, %v265
      %v536 = vpop.permute.xlu0 %535
      %537 = vset.pattern.permute.xlu0 0
      %538 = vperm.xlu0 %537, %v266
      %v539 = vpop.permute.xlu0 %538
      %540 = vset.pattern.permute.xlu0 0
      %541 = vperm.xlu0 %540, %v267
      %v542 = vpop.permute.xlu0 %541
      %543 = vset.pattern.permute.xlu0 0
      %544 = vperm.xlu0 %543, %v268
      %v545 = vpop.permute.xlu0 %544
      %546 = vset.pattern.permute.xlu0 0
      %547 = vperm.xlu0 %546, %v269
      %v548 = vpop.permute.xlu0 %547
      %549 = vset.pattern.permute.xlu0 0
      %550 = vperm.xlu0 %549, %v270
      %v551 = vpop.permute.xlu0 %550
      %552 = vset.pattern.permute.xlu0 0
      %553 = vperm.xlu0 %552, %v271
      %v554 = vpop.permute.xlu0 %553
      %555 = vset.pattern.permute.xlu0 0
      %556 = vperm.xlu0 %555, %v272
      %v557 = vpop.permute.xlu0 %556
      %558 = vset.pattern.permute.xlu0 0
      %559 = vperm.xlu0 %558, %v273
      %v560 = vpop.permute.xlu0 %559
      %561 = vset.pattern.permute.xlu0 0
      %562 = vperm.xlu0 %561, %v274
      %v563 = vpop.permute.xlu0 %562
      %564 = vset.pattern.permute.xlu0 0
      %565 = vperm.xlu0 %564, %v275
      %v566 = vpop.permute.xlu0 %565
      %567 = vset.pattern.permute.xlu0 0
      %568 = vperm.xlu0 %567, %v276
      %v569 = vpop.permute.xlu0 %568
      %570 = vset.pattern.permute.xlu0 0
      %571 = vperm.xlu0 %570, %v277
      %v572 = vpop.permute.xlu0 %571
      %573 = vset.pattern.permute.xlu0 0
      %574 = vperm.xlu0 %573, %v278
      %v575 = vpop.permute.xlu0 %574
      %576 = vset.pattern.permute.xlu0 0
      %577 = vperm.xlu0 %576, %v279
      %v578 = vpop.permute.xlu0 %577
      %579 = vset.pattern.permute.xlu0 0
      %580 = vperm.xlu0 %579, %v280
      %v581 = vpop.permute.xlu0 %580
      %582 = vset.pattern.permute.xlu0 0
      %583 = vperm.xlu0 %582, %v281
      %v584 = vpop.permute.xlu0 %583
      %585 = vset.pattern.permute.xlu0 0
      %586 = vperm.xlu0 %585, %v282
      %v587 = vpop.permute.xlu0 %586
      %588 = vset.pattern.permute.xlu0 0
      %589 = vperm.xlu0 %588, %v283
      %v590 = vpop.permute.xlu0 %589
      %591 = vset.pattern.permute.xlu0 0
      %592 = vperm.xlu0 %591, %v284
      %v593 = vpop.permute.xlu0 %592
      %594 = vset.pattern.permute.xlu0 0
      %595 = vperm.xlu0 %594, %v285
      %v596 = vpop.permute.xlu0 %595
      %597 = vset.pattern.permute.xlu0 0
      %598 = vperm.xlu0 %597, %v286
      %v599 = vpop.permute.xlu0 %598
      %600 = vset.pattern.permute.xlu0 0
      %601 = vperm.xlu0 %600, %v287
      %v602 = vpop.permute.xlu0 %601
      %603 = vset.pattern.permute.xlu0 0
      %604 = vperm.xlu0 %603, %v288
      %v605 = vpop.permute.xlu0 %604
      %606 = vset.pattern.permute.xlu0 0
      %607 = vperm.xlu0 %606, %v289
      %v608 = vpop.permute.xlu0 %607
      %609 = vset.pattern.permute.xlu0 0
      %610 = vperm.xlu0 %609, %v290
      %v611 = vpop.permute.xlu0 %610
      %612 = vset.pattern.permute.xlu0 0
      %613 = vperm.xlu0 %612, %v291
      %v614 = vpop.permute.xlu0 %613
      %615 = vset.pattern.permute.xlu0 0
      %616 = vperm.xlu0 %615, %v292
      %v617 = vpop.permute.xlu0 %616
      %618 = vset.pattern.permute.xlu0 0
      %619 = vperm.xlu0 %618, %v293
      %v620 = vpop.permute.xlu0 %619
      %621 = vset.pattern.permute.xlu0 0
      %622 = vperm.xlu0 %621, %v294
      %v623 = vpop.permute.xlu0 %622
      %624 = vset.pattern.permute.xlu0 0
      %625 = vperm.xlu0 %624, %v295
      %v626 = vpop.permute.xlu0 %625
      %627 = vset.pattern.permute.xlu0 0
      %628 = vperm.xlu0 %627, %v296
      %v629 = vpop.permute.xlu0 %628
      %630 = vset.pattern.permute.xlu0 0
      %631 = vperm.xlu0 %630, %v297
      %v632 = vpop.permute.xlu0 %631
      %633 = vset.pattern.permute.xlu0 0
      %634 = vperm.xlu0 %633, %v298
      %v635 = vpop.permute.xlu0 %634
      %636 = vset.pattern.permute.xlu0 0
      %637 = vperm.xlu0 %636, %v299
      %v638 = vpop.permute.xlu0 %637
      %639 = vset.pattern.permute.xlu0 0
      %640 = vperm.xlu0 %639, %v300
      %v641 = vpop.permute.xlu0 %640
      %642 = vset.pattern.permute.xlu0 0
      %643 = vperm.xlu0 %642, %v301
      %v644 = vpop.permute.xlu0 %643
      %645 = vset.pattern.permute.xlu0 0
      %646 = vperm.xlu0 %645, %v302
      %v647 = vpop.permute.xlu0 %646
      %648 = vset.pattern.permute.xlu0 0
      %649 = vperm.xlu0 %648, %v303
      %v650 = vpop.permute.xlu0 %649
      %651 = vset.pattern.permute.xlu0 0
      %652 = vperm.xlu0 %651, %v304
      %v653 = vpop.permute.xlu0 %652
      %654 = vset.pattern.permute.xlu0 0
      %655 = vperm.xlu0 %654, %v305
      %v656 = vpop.permute.xlu0 %655
      %657 = vset.pattern.permute.xlu0 0
      %658 = vperm.xlu0 %657, %v306
      %v659 = vpop.permute.xlu0 %658
      %660 = vset.pattern.permute.xlu0 0
      %661 = vperm.xlu0 %660, %v307
      %v662 = vpop.permute.xlu0 %661
      %663 = vset.pattern.permute.xlu0 0
      %664 = vperm.xlu0 %663, %v308
      %v665 = vpop.permute.xlu0 %664
      %666 = vset.pattern.permute.xlu0 0
      %667 = vperm.xlu0 %666, %v309
      %v668 = vpop.permute.xlu0 %667
      %669 = vset.pattern.permute.xlu0 0
      %670 = vperm.xlu0 %669, %v310
      %v671 = vpop.permute.xlu0 %670
      %672 = vset.pattern.permute.xlu0 0
      %673 = vperm.xlu0 %672, %v311
      %v674 = vpop.permute.xlu0 %673
      %675 = vset.pattern.permute.xlu0 0
      %676 = vperm.xlu0 %675, %v312
      %v677 = vpop.permute.xlu0 %676
      %678 = vset.pattern.permute.xlu0 0
      %679 = vperm.xlu0 %678, %v313
      %v680 = vpop.permute.xlu0 %679
      %681 = vset.pattern.permute.xlu0 0
      %682 = vperm.xlu0 %681, %v314
      %v683 = vpop.permute.xlu0 %682
      %684 = vset.pattern.permute.xlu0 0
      %685 = vperm.xlu0 %684, %v315
      %v686 = vpop.permute.xlu0 %685
      %687 = vset.pattern.permute.xlu0 0
      %688 = vperm.xlu0 %687, %v316
      %v689 = vpop.permute.xlu0 %688
      %690 = vset.pattern.permute.xlu0 0
      %691 = vperm.xlu0 %690, %v317
      %v692 = vpop.permute.xlu0 %691
      %693 = vset.pattern.permute.xlu0 0
      %694 = vperm.xlu0 %693, %v318
      %v695 = vpop.permute.xlu0 %694
      %696 = vset.pattern.permute.xlu0 0
      %697 = vperm.xlu0 %696, %v319
      %v698 = vpop.permute.xlu0 %697
      %699 = vset.pattern.permute.xlu0 0
      %700 = vperm.xlu0 %699, %v320
      %v701 = vpop.permute.xlu0 %700
      %702 = vset.pattern.permute.xlu0 0
      %703 = vperm.xlu0 %702, %v321
      %v704 = vpop.permute.xlu0 %703
      %705 = vset.pattern.permute.xlu0 0
      %706 = vperm.xlu0 %705, %v322
      %v707 = vpop.permute.xlu0 %706
      %708 = vset.pattern.permute.xlu0 0
      %709 = vperm.xlu0 %708, %v323
      %v710 = vpop.permute.xlu0 %709
      %vm711 = vcmp.eq.s32.totalorder %v325, %v329
      %vm712 = vcmp.eq.s32.totalorder %v326, %v329
      %vm713 = vcmp.eq.s32.totalorder %v325, %v332
      %vm714 = vcmp.eq.s32.totalorder %v326, %v332
      %vm715 = vcmp.eq.s32.totalorder %v325, %v335
      %vm716 = vcmp.eq.s32.totalorder %v326, %v335
      %vm717 = vcmp.eq.s32.totalorder %v325, %v338
      %vm718 = vcmp.eq.s32.totalorder %v326, %v338
      %vm719 = vcmp.eq.s32.totalorder %v325, %v341
      %vm720 = vcmp.eq.s32.totalorder %v326, %v341
      %vm721 = vcmp.eq.s32.totalorder %v325, %v344
      %vm722 = vcmp.eq.s32.totalorder %v326, %v344
      %vm723 = vcmp.eq.s32.totalorder %v325, %v347
      %vm724 = vcmp.eq.s32.totalorder %v326, %v347
      %vm725 = vcmp.eq.s32.totalorder %v325, %v350
      %vm726 = vcmp.eq.s32.totalorder %v326, %v350
      %vm727 = vcmp.eq.s32.totalorder %v325, %v353
      %vm728 = vcmp.eq.s32.totalorder %v326, %v353
      %vm729 = vcmp.eq.s32.totalorder %v325, %v356
      %vm730 = vcmp.eq.s32.totalorder %v326, %v356
      %vm731 = vcmp.eq.s32.totalorder %v325, %v359
      %vm732 = vcmp.eq.s32.totalorder %v326, %v359
      %vm733 = vcmp.eq.s32.totalorder %v325, %v362
      %vm734 = vcmp.eq.s32.totalorder %v326, %v362
      %vm735 = vcmp.eq.s32.totalorder %v325, %v365
      %vm736 = vcmp.eq.s32.totalorder %v326, %v365
      %vm737 = vcmp.eq.s32.totalorder %v325, %v368
      %vm738 = vcmp.eq.s32.totalorder %v326, %v368
      %vm739 = vcmp.eq.s32.totalorder %v325, %v371
      %vm740 = vcmp.eq.s32.totalorder %v326, %v371
      %vm741 = vcmp.eq.s32.totalorder %v325, %v374
      %vm742 = vcmp.eq.s32.totalorder %v326, %v374
      %vm743 = vcmp.eq.s32.totalorder %v325, %v377
      %vm744 = vcmp.eq.s32.totalorder %v326, %v377
      %vm745 = vcmp.eq.s32.totalorder %v325, %v380
      %vm746 = vcmp.eq.s32.totalorder %v326, %v380
      %vm747 = vcmp.eq.s32.totalorder %v325, %v383
      %vm748 = vcmp.eq.s32.totalorder %v326, %v383
      %vm749 = vcmp.eq.s32.totalorder %v325, %v386
      %vm750 = vcmp.eq.s32.totalorder %v326, %v386
      %vm751 = vcmp.eq.s32.totalorder %v325, %v389
      %vm752 = vcmp.eq.s32.totalorder %v326, %v389
      %vm753 = vcmp.eq.s32.totalorder %v325, %v392
      %vm754 = vcmp.eq.s32.totalorder %v326, %v392
      %vm755 = vcmp.eq.s32.totalorder %v325, %v395
      %vm756 = vcmp.eq.s32.totalorder %v326, %v395
      %vm757 = vcmp.eq.s32.totalorder %v325, %v398
      %vm758 = vcmp.eq.s32.totalorder %v326, %v398
      %vm759 = vcmp.eq.s32.totalorder %v325, %v401
      %vm760 = vcmp.eq.s32.totalorder %v326, %v401
      %vm761 = vcmp.eq.s32.totalorder %v325, %v404
      %vm762 = vcmp.eq.s32.totalorder %v326, %v404
      %vm763 = vcmp.eq.s32.totalorder %v325, %v407
      %vm764 = vcmp.eq.s32.totalorder %v326, %v407
      %vm765 = vcmp.eq.s32.totalorder %v325, %v410
      %vm766 = vcmp.eq.s32.totalorder %v326, %v410
      %vm767 = vcmp.eq.s32.totalorder %v325, %v413
      %vm768 = vcmp.eq.s32.totalorder %v326, %v413
      %vm769 = vcmp.eq.s32.totalorder %v325, %v416
      %vm770 = vcmp.eq.s32.totalorder %v326, %v416
      %vm771 = vcmp.eq.s32.totalorder %v325, %v419
      %vm772 = vcmp.eq.s32.totalorder %v326, %v419
      %vm773 = vcmp.eq.s32.totalorder %v325, %v422
      %vm774 = vcmp.eq.s32.totalorder %v326, %v422
      %vm775 = vcmp.eq.s32.totalorder %v325, %v425
      %vm776 = vcmp.eq.s32.totalorder %v326, %v425
      %vm777 = vcmp.eq.s32.totalorder %v325, %v428
      %vm778 = vcmp.eq.s32.totalorder %v326, %v428
      %vm779 = vcmp.eq.s32.totalorder %v325, %v431
      %vm780 = vcmp.eq.s32.totalorder %v326, %v431
      %vm781 = vcmp.eq.s32.totalorder %v325, %v434
      %vm782 = vcmp.eq.s32.totalorder %v326, %v434
      %vm783 = vcmp.eq.s32.totalorder %v325, %v437
      %vm784 = vcmp.eq.s32.totalorder %v326, %v437
      %vm785 = vcmp.eq.s32.totalorder %v325, %v440
      %vm786 = vcmp.eq.s32.totalorder %v326, %v440
      %vm787 = vcmp.eq.s32.totalorder %v325, %v443
      %vm788 = vcmp.eq.s32.totalorder %v326, %v443
      %vm789 = vcmp.eq.s32.totalorder %v325, %v446
      %vm790 = vcmp.eq.s32.totalorder %v326, %v446
      %vm791 = vcmp.eq.s32.totalorder %v325, %v449
      %vm792 = vcmp.eq.s32.totalorder %v326, %v449
      %vm793 = vcmp.eq.s32.totalorder %v325, %v452
      %vm794 = vcmp.eq.s32.totalorder %v326, %v452
      %vm795 = vcmp.eq.s32.totalorder %v325, %v455
      %vm796 = vcmp.eq.s32.totalorder %v326, %v455
      %vm797 = vcmp.eq.s32.totalorder %v325, %v458
      %vm798 = vcmp.eq.s32.totalorder %v326, %v458
      %vm799 = vcmp.eq.s32.totalorder %v325, %v461
      %vm800 = vcmp.eq.s32.totalorder %v326, %v461
      %vm801 = vcmp.eq.s32.totalorder %v325, %v464
      %vm802 = vcmp.eq.s32.totalorder %v326, %v464
      %vm803 = vcmp.eq.s32.totalorder %v325, %v467
      %vm804 = vcmp.eq.s32.totalorder %v326, %v467
      %vm805 = vcmp.eq.s32.totalorder %v325, %v470
      %vm806 = vcmp.eq.s32.totalorder %v326, %v470
      %vm807 = vcmp.eq.s32.totalorder %v325, %v473
      %vm808 = vcmp.eq.s32.totalorder %v326, %v473
      %vm809 = vcmp.eq.s32.totalorder %v325, %v476
      %vm810 = vcmp.eq.s32.totalorder %v326, %v476
      %vm811 = vcmp.eq.s32.totalorder %v325, %v479
      %vm812 = vcmp.eq.s32.totalorder %v326, %v479
      %vm813 = vcmp.eq.s32.totalorder %v325, %v482
      %vm814 = vcmp.eq.s32.totalorder %v326, %v482
      %vm815 = vcmp.eq.s32.totalorder %v325, %v485
      %vm816 = vcmp.eq.s32.totalorder %v326, %v485
      %vm817 = vcmp.eq.s32.totalorder %v325, %v488
      %vm818 = vcmp.eq.s32.totalorder %v326, %v488
      %vm819 = vcmp.eq.s32.totalorder %v325, %v491
      %vm820 = vcmp.eq.s32.totalorder %v326, %v491
      %vm821 = vcmp.eq.s32.totalorder %v325, %v494
      %vm822 = vcmp.eq.s32.totalorder %v326, %v494
      %vm823 = vcmp.eq.s32.totalorder %v325, %v497
      %vm824 = vcmp.eq.s32.totalorder %v326, %v497
      %vm825 = vcmp.eq.s32.totalorder %v325, %v500
      %vm826 = vcmp.eq.s32.totalorder %v326, %v500
      %vm827 = vcmp.eq.s32.totalorder %v325, %v503
      %vm828 = vcmp.eq.s32.totalorder %v326, %v503
      %vm829 = vcmp.eq.s32.totalorder %v325, %v506
      %vm830 = vcmp.eq.s32.totalorder %v326, %v506
      %vm831 = vcmp.eq.s32.totalorder %v325, %v509
      %vm832 = vcmp.eq.s32.totalorder %v326, %v509
      %vm833 = vcmp.eq.s32.totalorder %v325, %v512
      %vm834 = vcmp.eq.s32.totalorder %v326, %v512
      %vm835 = vcmp.eq.s32.totalorder %v325, %v515
      %vm836 = vcmp.eq.s32.totalorder %v326, %v515
      %vm837 = vcmp.eq.s32.totalorder %v325, %v518
      %vm838 = vcmp.eq.s32.totalorder %v326, %v518
      %vm839 = vcmp.eq.s32.totalorder %v325, %v521
      %vm840 = vcmp.eq.s32.totalorder %v326, %v521
      %vm841 = vcmp.eq.s32.totalorder %v325, %v524
      %vm842 = vcmp.eq.s32.totalorder %v326, %v524
      %vm843 = vcmp.eq.s32.totalorder %v325, %v527
      %vm844 = vcmp.eq.s32.totalorder %v326, %v527
      %vm845 = vcmp.eq.s32.totalorder %v325, %v530
      %vm846 = vcmp.eq.s32.totalorder %v326, %v530
      %vm847 = vcmp.eq.s32.totalorder %v325, %v533
      %vm848 = vcmp.eq.s32.totalorder %v326, %v533
      %vm849 = vcmp.eq.s32.totalorder %v325, %v536
      %vm850 = vcmp.eq.s32.totalorder %v326, %v536
      %vm851 = vcmp.eq.s32.totalorder %v325, %v539
      %vm852 = vcmp.eq.s32.totalorder %v326, %v539
      %vm853 = vcmp.eq.s32.totalorder %v325, %v542
      %vm854 = vcmp.eq.s32.totalorder %v326, %v542
      %vm855 = vcmp.eq.s32.totalorder %v325, %v545
      %vm856 = vcmp.eq.s32.totalorder %v326, %v545
      %vm857 = vcmp.eq.s32.totalorder %v325, %v548
      %vm858 = vcmp.eq.s32.totalorder %v326, %v548
      %vm859 = vcmp.eq.s32.totalorder %v325, %v551
      %vm860 = vcmp.eq.s32.totalorder %v326, %v551
      %vm861 = vcmp.eq.s32.totalorder %v325, %v554
      %vm862 = vcmp.eq.s32.totalorder %v326, %v554
      %vm863 = vcmp.eq.s32.totalorder %v325, %v557
      %vm864 = vcmp.eq.s32.totalorder %v326, %v557
      %vm865 = vcmp.eq.s32.totalorder %v325, %v560
      %vm866 = vcmp.eq.s32.totalorder %v326, %v560
      %vm867 = vcmp.eq.s32.totalorder %v325, %v563
      %vm868 = vcmp.eq.s32.totalorder %v326, %v563
      %vm869 = vcmp.eq.s32.totalorder %v325, %v566
      %vm870 = vcmp.eq.s32.totalorder %v326, %v566
      %vm871 = vcmp.eq.s32.totalorder %v325, %v569
      %vm872 = vcmp.eq.s32.totalorder %v326, %v569
      %vm873 = vcmp.eq.s32.totalorder %v325, %v572
      %vm874 = vcmp.eq.s32.totalorder %v326, %v572
      %vm875 = vcmp.eq.s32.totalorder %v325, %v575
      %vm876 = vcmp.eq.s32.totalorder %v326, %v575
      %vm877 = vcmp.eq.s32.totalorder %v325, %v578
      %vm878 = vcmp.eq.s32.totalorder %v326, %v578
      %vm879 = vcmp.eq.s32.totalorder %v325, %v581
      %vm880 = vcmp.eq.s32.totalorder %v326, %v581
      %vm881 = vcmp.eq.s32.totalorder %v325, %v584
      %vm882 = vcmp.eq.s32.totalorder %v326, %v584
      %vm883 = vcmp.eq.s32.totalorder %v325, %v587
      %vm884 = vcmp.eq.s32.totalorder %v326, %v587
      %vm885 = vcmp.eq.s32.totalorder %v325, %v590
      %vm886 = vcmp.eq.s32.totalorder %v326, %v590
      %vm887 = vcmp.eq.s32.totalorder %v325, %v593
      %vm888 = vcmp.eq.s32.totalorder %v326, %v593
      %vm889 = vcmp.eq.s32.totalorder %v325, %v596
      %vm890 = vcmp.eq.s32.totalorder %v326, %v596
      %vm891 = vcmp.eq.s32.totalorder %v325, %v599
      %vm892 = vcmp.eq.s32.totalorder %v326, %v599
      %vm893 = vcmp.eq.s32.totalorder %v325, %v602
      %vm894 = vcmp.eq.s32.totalorder %v326, %v602
      %vm895 = vcmp.eq.s32.totalorder %v325, %v605
      %vm896 = vcmp.eq.s32.totalorder %v326, %v605
      %vm897 = vcmp.eq.s32.totalorder %v325, %v608
      %vm898 = vcmp.eq.s32.totalorder %v326, %v608
      %vm899 = vcmp.eq.s32.totalorder %v325, %v611
      %vm900 = vcmp.eq.s32.totalorder %v326, %v611
      %vm901 = vcmp.eq.s32.totalorder %v325, %v614
      %vm902 = vcmp.eq.s32.totalorder %v326, %v614
      %vm903 = vcmp.eq.s32.totalorder %v325, %v617
      %vm904 = vcmp.eq.s32.totalorder %v326, %v617
      %vm905 = vcmp.eq.s32.totalorder %v325, %v620
      %vm906 = vcmp.eq.s32.totalorder %v326, %v620
      %vm907 = vcmp.eq.s32.totalorder %v325, %v623
      %vm908 = vcmp.eq.s32.totalorder %v326, %v623
      %vm909 = vcmp.eq.s32.totalorder %v325, %v626
      %vm910 = vcmp.eq.s32.totalorder %v326, %v626
      %vm911 = vcmp.eq.s32.totalorder %v325, %v629
      %vm912 = vcmp.eq.s32.totalorder %v326, %v629
      %vm913 = vcmp.eq.s32.totalorder %v325, %v632
      %vm914 = vcmp.eq.s32.totalorder %v326, %v632
      %vm915 = vcmp.eq.s32.totalorder %v325, %v635
      %vm916 = vcmp.eq.s32.totalorder %v326, %v635
      %vm917 = vcmp.eq.s32.totalorder %v325, %v638
      %vm918 = vcmp.eq.s32.totalorder %v326, %v638
      %vm919 = vcmp.eq.s32.totalorder %v325, %v641
      %vm920 = vcmp.eq.s32.totalorder %v326, %v641
      %vm921 = vcmp.eq.s32.totalorder %v325, %v644
      %vm922 = vcmp.eq.s32.totalorder %v326, %v644
      %vm923 = vcmp.eq.s32.totalorder %v325, %v647
      %vm924 = vcmp.eq.s32.totalorder %v326, %v647
      %vm925 = vcmp.eq.s32.totalorder %v325, %v650
      %vm926 = vcmp.eq.s32.totalorder %v326, %v650
      %vm927 = vcmp.eq.s32.totalorder %v325, %v653
      %vm928 = vcmp.eq.s32.totalorder %v326, %v653
      %vm929 = vcmp.eq.s32.totalorder %v325, %v656
      %vm930 = vcmp.eq.s32.totalorder %v326, %v656
      %vm931 = vcmp.eq.s32.totalorder %v325, %v659
      %vm932 = vcmp.eq.s32.totalorder %v326, %v659
      %vm933 = vcmp.eq.s32.totalorder %v325, %v662
      %vm934 = vcmp.eq.s32.totalorder %v326, %v662
      %vm935 = vcmp.eq.s32.totalorder %v325, %v665
      %vm936 = vcmp.eq.s32.totalorder %v326, %v665
      %vm937 = vcmp.eq.s32.totalorder %v325, %v668
      %vm938 = vcmp.eq.s32.totalorder %v326, %v668
      %vm939 = vcmp.eq.s32.totalorder %v325, %v671
      %vm940 = vcmp.eq.s32.totalorder %v326, %v671
      %vm941 = vcmp.eq.s32.totalorder %v325, %v674
      %vm942 = vcmp.eq.s32.totalorder %v326, %v674
      %vm943 = vcmp.eq.s32.totalorder %v325, %v677
      %vm944 = vcmp.eq.s32.totalorder %v326, %v677
      %vm945 = vcmp.eq.s32.totalorder %v325, %v680
      %vm946 = vcmp.eq.s32.totalorder %v326, %v680
      %vm947 = vcmp.eq.s32.totalorder %v325, %v683
      %vm948 = vcmp.eq.s32.totalorder %v326, %v683
      %vm949 = vcmp.eq.s32.totalorder %v325, %v686
      %vm950 = vcmp.eq.s32.totalorder %v326, %v686
      %vm951 = vcmp.eq.s32.totalorder %v325, %v689
      %vm952 = vcmp.eq.s32.totalorder %v326, %v689
      %vm953 = vcmp.eq.s32.totalorder %v325, %v692
      %vm954 = vcmp.eq.s32.totalorder %v326, %v692
      %vm955 = vcmp.eq.s32.totalorder %v325, %v695
      %vm956 = vcmp.eq.s32.totalorder %v326, %v695
      %vm957 = vcmp.eq.s32.totalorder %v325, %v698
      %vm958 = vcmp.eq.s32.totalorder %v326, %v698
      %vm959 = vcmp.eq.s32.totalorder %v325, %v701
      %vm960 = vcmp.eq.s32.totalorder %v326, %v701
      %vm961 = vcmp.eq.s32.totalorder %v325, %v704
      %vm962 = vcmp.eq.s32.totalorder %v326, %v704
      %vm963 = vcmp.eq.s32.totalorder %v325, %v707
      %vm964 = vcmp.eq.s32.totalorder %v326, %v707
      %vm965 = vcmp.eq.s32.totalorder %v325, %v710
      %vm966 = vcmp.eq.s32.totalorder %v326, %v710
      %v967 = vsel %vm711, 1, 0
      %v968 = vsel %vm712, 1, 0
      %v969 = vsel %vm713, 1, 0
      %v970 = vsel %vm714, 1, 0
      %v971 = vsel %vm715, 1, 0
      %v972 = vsel %vm716, 1, 0
      %v973 = vsel %vm717, 1, 0
      %v974 = vsel %vm718, 1, 0
      %v975 = vsel %vm719, 1, 0
      %v976 = vsel %vm720, 1, 0
      %v977 = vsel %vm721, 1, 0
      %v978 = vsel %vm722, 1, 0
      %v979 = vsel %vm723, 1, 0
      %v980 = vsel %vm724, 1, 0
      %v981 = vsel %vm725, 1, 0
      %v982 = vsel %vm726, 1, 0
      %v983 = vsel %vm727, 1, 0
      %v984 = vsel %vm728, 1, 0
      %v985 = vsel %vm729, 1, 0
      %v986 = vsel %vm730, 1, 0
      %v987 = vsel %vm731, 1, 0
      %v988 = vsel %vm732, 1, 0
      %v989 = vsel %vm733, 1, 0
      %v990 = vsel %vm734, 1, 0
      %v991 = vsel %vm735, 1, 0
      %v992 = vsel %vm736, 1, 0
      %v993 = vsel %vm737, 1, 0
      %v994 = vsel %vm738, 1, 0
      %v995 = vsel %vm739, 1, 0
      %v996 = vsel %vm740, 1, 0
      %v997 = vsel %vm741, 1, 0
      %v998 = vsel %vm742, 1, 0
      %v999 = vsel %vm743, 1, 0
      %v1000 = vsel %vm744, 1, 0
      %v1001 = vsel %vm745, 1, 0
      %v1002 = vsel %vm746, 1, 0
      %v1003 = vsel %vm747, 1, 0
      %v1004 = vsel %vm748, 1, 0
      %v1005 = vsel %vm749, 1, 0
      %v1006 = vsel %vm750, 1, 0
      %v1007 = vsel %vm751, 1, 0
      %v1008 = vsel %vm752, 1, 0
      %v1009 = vsel %vm753, 1, 0
      %v1010 = vsel %vm754, 1, 0
      %v1011 = vsel %vm755, 1, 0
      %v1012 = vsel %vm756, 1, 0
      %v1013 = vsel %vm757, 1, 0
      %v1014 = vsel %vm758, 1, 0
      %v1015 = vsel %vm759, 1, 0
      %v1016 = vsel %vm760, 1, 0
      %v1017 = vsel %vm761, 1, 0
      %v1018 = vsel %vm762, 1, 0
      %v1019 = vsel %vm763, 1, 0
      %v1020 = vsel %vm764, 1, 0
      %v1021 = vsel %vm765, 1, 0
      %v1022 = vsel %vm766, 1, 0
      %v1023 = vsel %vm767, 1, 0
      %v1024 = vsel %vm768, 1, 0
      %v1025 = vsel %vm769, 1, 0
      %v1026 = vsel %vm770, 1, 0
      %v1027 = vsel %vm771, 1, 0
      %v1028 = vsel %vm772, 1, 0
      %v1029 = vsel %vm773, 1, 0
      %v1030 = vsel %vm774, 1, 0
      %v1031 = vsel %vm775, 1, 0
      %v1032 = vsel %vm776, 1, 0
      %v1033 = vsel %vm777, 1, 0
      %v1034 = vsel %vm778, 1, 0
      %v1035 = vsel %vm779, 1, 0
      %v1036 = vsel %vm780, 1, 0
      %v1037 = vsel %vm781, 1, 0
      %v1038 = vsel %vm782, 1, 0
      %v1039 = vsel %vm783, 1, 0
      %v1040 = vsel %vm784, 1, 0
      %v1041 = vsel %vm785, 1, 0
      %v1042 = vsel %vm786, 1, 0
      %v1043 = vsel %vm787, 1, 0
      %v1044 = vsel %vm788, 1, 0
      %v1045 = vsel %vm789, 1, 0
      %v1046 = vsel %vm790, 1, 0
      %v1047 = vsel %vm791, 1, 0
      %v1048 = vsel %vm792, 1, 0
      %v1049 = vsel %vm793, 1, 0
      %v1050 = vsel %vm794, 1, 0
      %v1051 = vsel %vm795, 1, 0
      %v1052 = vsel %vm796, 1, 0
      %v1053 = vsel %vm797, 1, 0
      %v1054 = vsel %vm798, 1, 0
      %v1055 = vsel %vm799, 1, 0
      %v1056 = vsel %vm800, 1, 0
      %v1057 = vsel %vm801, 1, 0
      %v1058 = vsel %vm802, 1, 0
      %v1059 = vsel %vm803, 1, 0
      %v1060 = vsel %vm804, 1, 0
      %v1061 = vsel %vm805, 1, 0
      %v1062 = vsel %vm806, 1, 0
      %v1063 = vsel %vm807, 1, 0
      %v1064 = vsel %vm808, 1, 0
      %v1065 = vsel %vm809, 1, 0
      %v1066 = vsel %vm810, 1, 0
      %v1067 = vsel %vm811, 1, 0
      %v1068 = vsel %vm812, 1, 0
      %v1069 = vsel %vm813, 1, 0
      %v1070 = vsel %vm814, 1, 0
      %v1071 = vsel %vm815, 1, 0
      %v1072 = vsel %vm816, 1, 0
      %v1073 = vsel %vm817, 1, 0
      %v1074 = vsel %vm818, 1, 0
      %v1075 = vsel %vm819, 1, 0
      %v1076 = vsel %vm820, 1, 0
      %v1077 = vsel %vm821, 1, 0
      %v1078 = vsel %vm822, 1, 0
      %v1079 = vsel %vm823, 1, 0
      %v1080 = vsel %vm824, 1, 0
      %v1081 = vsel %vm825, 1, 0
      %v1082 = vsel %vm826, 1, 0
      %v1083 = vsel %vm827, 1, 0
      %v1084 = vsel %vm828, 1, 0
      %v1085 = vsel %vm829, 1, 0
      %v1086 = vsel %vm830, 1, 0
      %v1087 = vsel %vm831, 1, 0
      %v1088 = vsel %vm832, 1, 0
      %v1089 = vsel %vm833, 1, 0
      %v1090 = vsel %vm834, 1, 0
      %v1091 = vsel %vm835, 1, 0
      %v1092 = vsel %vm836, 1, 0
      %v1093 = vsel %vm837, 1, 0
      %v1094 = vsel %vm838, 1, 0
      %v1095 = vsel %vm839, 1, 0
      %v1096 = vsel %vm840, 1, 0
      %v1097 = vsel %vm841, 1, 0
      %v1098 = vsel %vm842, 1, 0
      %v1099 = vsel %vm843, 1, 0
      %v1100 = vsel %vm844, 1, 0
      %v1101 = vsel %vm845, 1, 0
      %v1102 = vsel %vm846, 1, 0
      %v1103 = vsel %vm847, 1, 0
      %v1104 = vsel %vm848, 1, 0
      %v1105 = vsel %vm849, 1, 0
      %v1106 = vsel %vm850, 1, 0
      %v1107 = vsel %vm851, 1, 0
      %v1108 = vsel %vm852, 1, 0
      %v1109 = vsel %vm853, 1, 0
      %v1110 = vsel %vm854, 1, 0
      %v1111 = vsel %vm855, 1, 0
      %v1112 = vsel %vm856, 1, 0
      %v1113 = vsel %vm857, 1, 0
      %v1114 = vsel %vm858, 1, 0
      %v1115 = vsel %vm859, 1, 0
      %v1116 = vsel %vm860, 1, 0
      %v1117 = vsel %vm861, 1, 0
      %v1118 = vsel %vm862, 1, 0
      %v1119 = vsel %vm863, 1, 0
      %v1120 = vsel %vm864, 1, 0
      %v1121 = vsel %vm865, 1, 0
      %v1122 = vsel %vm866, 1, 0
      %v1123 = vsel %vm867, 1, 0
      %v1124 = vsel %vm868, 1, 0
      %v1125 = vsel %vm869, 1, 0
      %v1126 = vsel %vm870, 1, 0
      %v1127 = vsel %vm871, 1, 0
      %v1128 = vsel %vm872, 1, 0
      %v1129 = vsel %vm873, 1, 0
      %v1130 = vsel %vm874, 1, 0
      %v1131 = vsel %vm875, 1, 0
      %v1132 = vsel %vm876, 1, 0
      %v1133 = vsel %vm877, 1, 0
      %v1134 = vsel %vm878, 1, 0
      %v1135 = vsel %vm879, 1, 0
      %v1136 = vsel %vm880, 1, 0
      %v1137 = vsel %vm881, 1, 0
      %v1138 = vsel %vm882, 1, 0
      %v1139 = vsel %vm883, 1, 0
      %v1140 = vsel %vm884, 1, 0
      %v1141 = vsel %vm885, 1, 0
      %v1142 = vsel %vm886, 1, 0
      %v1143 = vsel %vm887, 1, 0
      %v1144 = vsel %vm888, 1, 0
      %v1145 = vsel %vm889, 1, 0
      %v1146 = vsel %vm890, 1, 0
      %v1147 = vsel %vm891, 1, 0
      %v1148 = vsel %vm892, 1, 0
      %v1149 = vsel %vm893, 1, 0
      %v1150 = vsel %vm894, 1, 0
      %v1151 = vsel %vm895, 1, 0
      %v1152 = vsel %vm896, 1, 0
      %v1153 = vsel %vm897, 1, 0
      %v1154 = vsel %vm898, 1, 0
      %v1155 = vsel %vm899, 1, 0
      %v1156 = vsel %vm900, 1, 0
      %v1157 = vsel %vm901, 1, 0
      %v1158 = vsel %vm902, 1, 0
      %v1159 = vsel %vm903, 1, 0
      %v1160 = vsel %vm904, 1, 0
      %v1161 = vsel %vm905, 1, 0
      %v1162 = vsel %vm906, 1, 0
      %v1163 = vsel %vm907, 1, 0
      %v1164 = vsel %vm908, 1, 0
      %v1165 = vsel %vm909, 1, 0
      %v1166 = vsel %vm910, 1, 0
      %v1167 = vsel %vm911, 1, 0
      %v1168 = vsel %vm912, 1, 0
      %v1169 = vsel %vm913, 1, 0
      %v1170 = vsel %vm914, 1, 0
      %v1171 = vsel %vm915, 1, 0
      %v1172 = vsel %vm916, 1, 0
      %v1173 = vsel %vm917, 1, 0
      %v1174 = vsel %vm918, 1, 0
      %v1175 = vsel %vm919, 1, 0
      %v1176 = vsel %vm920, 1, 0
      %v1177 = vsel %vm921, 1, 0
      %v1178 = vsel %vm922, 1, 0
      %v1179 = vsel %vm923, 1, 0
      %v1180 = vsel %vm924, 1, 0
      %v1181 = vsel %vm925, 1, 0
      %v1182 = vsel %vm926, 1, 0
      %v1183 = vsel %vm927, 1, 0
      %v1184 = vsel %vm928, 1, 0
      %v1185 = vsel %vm929, 1, 0
      %v1186 = vsel %vm930, 1, 0
      %v1187 = vsel %vm931, 1, 0
      %v1188 = vsel %vm932, 1, 0
      %v1189 = vsel %vm933, 1, 0
      %v1190 = vsel %vm934, 1, 0
      %v1191 = vsel %vm935, 1, 0
      %v1192 = vsel %vm936, 1, 0
      %v1193 = vsel %vm937, 1, 0
      %v1194 = vsel %vm938, 1, 0
      %v1195 = vsel %vm939, 1, 0
      %v1196 = vsel %vm940, 1, 0
      %v1197 = vsel %vm941, 1, 0
      %v1198 = vsel %vm942, 1, 0
      %v1199 = vsel %vm943, 1, 0
      %v1200 = vsel %vm944, 1, 0
      %v1201 = vsel %vm945, 1, 0
      %v1202 = vsel %vm946, 1, 0
      %v1203 = vsel %vm947, 1, 0
      %v1204 = vsel %vm948, 1, 0
      %v1205 = vsel %vm949, 1, 0
      %v1206 = vsel %vm950, 1, 0
      %v1207 = vsel %vm951, 1, 0
      %v1208 = vsel %vm952, 1, 0
      %v1209 = vsel %vm953, 1, 0
      %v1210 = vsel %vm954, 1, 0
      %v1211 = vsel %vm955, 1, 0
      %v1212 = vsel %vm956, 1, 0
      %v1213 = vsel %vm957, 1, 0
      %v1214 = vsel %vm958, 1, 0
      %v1215 = vsel %vm959, 1, 0
      %v1216 = vsel %vm960, 1, 0
      %v1217 = vsel %vm961, 1, 0
      %v1218 = vsel %vm962, 1, 0
      %v1219 = vsel %vm963, 1, 0
      %v1220 = vsel %vm964, 1, 0
      %v1221 = vsel %vm965, 1, 0
      %v1222 = vsel %vm966, 1, 0
      %v1223 = vcvt.s32.f32 %v967
      %v1224 = vcvt.s32.f32 %v968
      %v1225 = vcvt.s32.f32 %v969
      %v1226 = vcvt.s32.f32 %v970
      %v1227 = vcvt.s32.f32 %v971
      %v1228 = vcvt.s32.f32 %v972
      %v1229 = vcvt.s32.f32 %v973
      %v1230 = vcvt.s32.f32 %v974
      %v1231 = vcvt.s32.f32 %v975
      %v1232 = vcvt.s32.f32 %v976
      %v1233 = vcvt.s32.f32 %v977
      %v1234 = vcvt.s32.f32 %v978
      %v1235 = vcvt.s32.f32 %v979
      %v1236 = vcvt.s32.f32 %v980
      %v1237 = vcvt.s32.f32 %v981
      %v1238 = vcvt.s32.f32 %v982
      %v1239 = vcvt.s32.f32 %v983
      %v1240 = vcvt.s32.f32 %v984
      %v1241 = vcvt.s32.f32 %v985
      %v1242 = vcvt.s32.f32 %v986
      %v1243 = vcvt.s32.f32 %v987
      %v1244 = vcvt.s32.f32 %v988
      %v1245 = vcvt.s32.f32 %v989
      %v1246 = vcvt.s32.f32 %v990
      %v1247 = vcvt.s32.f32 %v991
      %v1248 = vcvt.s32.f32 %v992
      %v1249 = vcvt.s32.f32 %v993
      %v1250 = vcvt.s32.f32 %v994
      %v1251 = vcvt.s32.f32 %v995
      %v1252 = vcvt.s32.f32 %v996
      %v1253 = vcvt.s32.f32 %v997
      %v1254 = vcvt.s32.f32 %v998
      %v1255 = vcvt.s32.f32 %v999
      %v1256 = vcvt.s32.f32 %v1000
      %v1257 = vcvt.s32.f32 %v1001
      %v1258 = vcvt.s32.f32 %v1002
      %v1259 = vcvt.s32.f32 %v1003
      %v1260 = vcvt.s32.f32 %v1004
      %v1261 = vcvt.s32.f32 %v1005
      %v1262 = vcvt.s32.f32 %v1006
      %v1263 = vcvt.s32.f32 %v1007
      %v1264 = vcvt.s32.f32 %v1008
      %v1265 = vcvt.s32.f32 %v1009
      %v1266 = vcvt.s32.f32 %v1010
      %v1267 = vcvt.s32.f32 %v1011
      %v1268 = vcvt.s32.f32 %v1012
      %v1269 = vcvt.s32.f32 %v1013
      %v1270 = vcvt.s32.f32 %v1014
      %v1271 = vcvt.s32.f32 %v1015
      %v1272 = vcvt.s32.f32 %v1016
      %v1273 = vcvt.s32.f32 %v1017
      %v1274 = vcvt.s32.f32 %v1018
      %v1275 = vcvt.s32.f32 %v1019
      %v1276 = vcvt.s32.f32 %v1020
      %v1277 = vcvt.s32.f32 %v1021
      %v1278 = vcvt.s32.f32 %v1022
      %v1279 = vcvt.s32.f32 %v1023
      %v1280 = vcvt.s32.f32 %v1024
      %v1281 = vcvt.s32.f32 %v1025
      %v1282 = vcvt.s32.f32 %v1026
      %v1283 = vcvt.s32.f32 %v1027
      %v1284 = vcvt.s32.f32 %v1028
      %v1285 = vcvt.s32.f32 %v1029
      %v1286 = vcvt.s32.f32 %v1030
      %v1287 = vcvt.s32.f32 %v1031
      %v1288 = vcvt.s32.f32 %v1032
      %v1289 = vcvt.s32.f32 %v1033
      %v1290 = vcvt.s32.f32 %v1034
      %v1291 = vcvt.s32.f32 %v1035
      %v1292 = vcvt.s32.f32 %v1036
      %v1293 = vcvt.s32.f32 %v1037
      %v1294 = vcvt.s32.f32 %v1038
      %v1295 = vcvt.s32.f32 %v1039
      %v1296 = vcvt.s32.f32 %v1040
      %v1297 = vcvt.s32.f32 %v1041
      %v1298 = vcvt.s32.f32 %v1042
      %v1299 = vcvt.s32.f32 %v1043
      %v1300 = vcvt.s32.f32 %v1044
      %v1301 = vcvt.s32.f32 %v1045
      %v1302 = vcvt.s32.f32 %v1046
      %v1303 = vcvt.s32.f32 %v1047
      %v1304 = vcvt.s32.f32 %v1048
      %v1305 = vcvt.s32.f32 %v1049
      %v1306 = vcvt.s32.f32 %v1050
      %v1307 = vcvt.s32.f32 %v1051
      %v1308 = vcvt.s32.f32 %v1052
      %v1309 = vcvt.s32.f32 %v1053
      %v1310 = vcvt.s32.f32 %v1054
      %v1311 = vcvt.s32.f32 %v1055
      %v1312 = vcvt.s32.f32 %v1056
      %v1313 = vcvt.s32.f32 %v1057
      %v1314 = vcvt.s32.f32 %v1058
      %v1315 = vcvt.s32.f32 %v1059
      %v1316 = vcvt.s32.f32 %v1060
      %v1317 = vcvt.s32.f32 %v1061
      %v1318 = vcvt.s32.f32 %v1062
      %v1319 = vcvt.s32.f32 %v1063
      %v1320 = vcvt.s32.f32 %v1064
      %v1321 = vcvt.s32.f32 %v1065
      %v1322 = vcvt.s32.f32 %v1066
      %v1323 = vcvt.s32.f32 %v1067
      %v1324 = vcvt.s32.f32 %v1068
      %v1325 = vcvt.s32.f32 %v1069
      %v1326 = vcvt.s32.f32 %v1070
      %v1327 = vcvt.s32.f32 %v1071
      %v1328 = vcvt.s32.f32 %v1072
      %v1329 = vcvt.s32.f32 %v1073
      %v1330 = vcvt.s32.f32 %v1074
      %v1331 = vcvt.s32.f32 %v1075
      %v1332 = vcvt.s32.f32 %v1076
      %v1333 = vcvt.s32.f32 %v1077
      %v1334 = vcvt.s32.f32 %v1078
      %v1335 = vcvt.s32.f32 %v1079
      %v1336 = vcvt.s32.f32 %v1080
      %v1337 = vcvt.s32.f32 %v1081
      %v1338 = vcvt.s32.f32 %v1082
      %v1339 = vcvt.s32.f32 %v1083
      %v1340 = vcvt.s32.f32 %v1084
      %v1341 = vcvt.s32.f32 %v1085
      %v1342 = vcvt.s32.f32 %v1086
      %v1343 = vcvt.s32.f32 %v1087
      %v1344 = vcvt.s32.f32 %v1088
      %v1345 = vcvt.s32.f32 %v1089
      %v1346 = vcvt.s32.f32 %v1090
      %v1347 = vcvt.s32.f32 %v1091
      %v1348 = vcvt.s32.f32 %v1092
      %v1349 = vcvt.s32.f32 %v1093
      %v1350 = vcvt.s32.f32 %v1094
      %v1351 = vcvt.s32.f32 %v1095
      %v1352 = vcvt.s32.f32 %v1096
      %v1353 = vcvt.s32.f32 %v1097
      %v1354 = vcvt.s32.f32 %v1098
      %v1355 = vcvt.s32.f32 %v1099
      %v1356 = vcvt.s32.f32 %v1100
      %v1357 = vcvt.s32.f32 %v1101
      %v1358 = vcvt.s32.f32 %v1102
      %v1359 = vcvt.s32.f32 %v1103
      %v1360 = vcvt.s32.f32 %v1104
      %v1361 = vcvt.s32.f32 %v1105
      %v1362 = vcvt.s32.f32 %v1106
      %v1363 = vcvt.s32.f32 %v1107
      %v1364 = vcvt.s32.f32 %v1108
      %v1365 = vcvt.s32.f32 %v1109
      %v1366 = vcvt.s32.f32 %v1110
      %v1367 = vcvt.s32.f32 %v1111
      %v1368 = vcvt.s32.f32 %v1112
      %v1369 = vcvt.s32.f32 %v1113
      %v1370 = vcvt.s32.f32 %v1114
      %v1371 = vcvt.s32.f32 %v1115
      %v1372 = vcvt.s32.f32 %v1116
      %v1373 = vcvt.s32.f32 %v1117
      %v1374 = vcvt.s32.f32 %v1118
      %v1375 = vcvt.s32.f32 %v1119
      %v1376 = vcvt.s32.f32 %v1120
      %v1377 = vcvt.s32.f32 %v1121
      %v1378 = vcvt.s32.f32 %v1122
      %v1379 = vcvt.s32.f32 %v1123
      %v1380 = vcvt.s32.f32 %v1124
      %v1381 = vcvt.s32.f32 %v1125
      %v1382 = vcvt.s32.f32 %v1126
      %v1383 = vcvt.s32.f32 %v1127
      %v1384 = vcvt.s32.f32 %v1128
      %v1385 = vcvt.s32.f32 %v1129
      %v1386 = vcvt.s32.f32 %v1130
      %v1387 = vcvt.s32.f32 %v1131
      %v1388 = vcvt.s32.f32 %v1132
      %v1389 = vcvt.s32.f32 %v1133
      %v1390 = vcvt.s32.f32 %v1134
      %v1391 = vcvt.s32.f32 %v1135
      %v1392 = vcvt.s32.f32 %v1136
      %v1393 = vcvt.s32.f32 %v1137
      %v1394 = vcvt.s32.f32 %v1138
      %v1395 = vcvt.s32.f32 %v1139
      %v1396 = vcvt.s32.f32 %v1140
      %v1397 = vcvt.s32.f32 %v1141
      %v1398 = vcvt.s32.f32 %v1142
      %v1399 = vcvt.s32.f32 %v1143
      %v1400 = vcvt.s32.f32 %v1144
      %v1401 = vcvt.s32.f32 %v1145
      %v1402 = vcvt.s32.f32 %v1146
      %v1403 = vcvt.s32.f32 %v1147
      %v1404 = vcvt.s32.f32 %v1148
      %v1405 = vcvt.s32.f32 %v1149
      %v1406 = vcvt.s32.f32 %v1150
      %v1407 = vcvt.s32.f32 %v1151
      %v1408 = vcvt.s32.f32 %v1152
      %v1409 = vcvt.s32.f32 %v1153
      %v1410 = vcvt.s32.f32 %v1154
      %v1411 = vcvt.s32.f32 %v1155
      %v1412 = vcvt.s32.f32 %v1156
      %v1413 = vcvt.s32.f32 %v1157
      %v1414 = vcvt.s32.f32 %v1158
      %v1415 = vcvt.s32.f32 %v1159
      %v1416 = vcvt.s32.f32 %v1160
      %v1417 = vcvt.s32.f32 %v1161
      %v1418 = vcvt.s32.f32 %v1162
      %v1419 = vcvt.s32.f32 %v1163
      %v1420 = vcvt.s32.f32 %v1164
      %v1421 = vcvt.s32.f32 %v1165
      %v1422 = vcvt.s32.f32 %v1166
      %v1423 = vcvt.s32.f32 %v1167
      %v1424 = vcvt.s32.f32 %v1168
      %v1425 = vcvt.s32.f32 %v1169
      %v1426 = vcvt.s32.f32 %v1170
      %v1427 = vcvt.s32.f32 %v1171
      %v1428 = vcvt.s32.f32 %v1172
      %v1429 = vcvt.s32.f32 %v1173
      %v1430 = vcvt.s32.f32 %v1174
      %v1431 = vcvt.s32.f32 %v1175
      %v1432 = vcvt.s32.f32 %v1176
      %v1433 = vcvt.s32.f32 %v1177
      %v1434 = vcvt.s32.f32 %v1178
      %v1435 = vcvt.s32.f32 %v1179
      %v1436 = vcvt.s32.f32 %v1180
      %v1437 = vcvt.s32.f32 %v1181
      %v1438 = vcvt.s32.f32 %v1182
      %v1439 = vcvt.s32.f32 %v1183
      %v1440 = vcvt.s32.f32 %v1184
      %v1441 = vcvt.s32.f32 %v1185
      %v1442 = vcvt.s32.f32 %v1186
      %v1443 = vcvt.s32.f32 %v1187
      %v1444 = vcvt.s32.f32 %v1188
      %v1445 = vcvt.s32.f32 %v1189
      %v1446 = vcvt.s32.f32 %v1190
      %v1447 = vcvt.s32.f32 %v1191
      %v1448 = vcvt.s32.f32 %v1192
      %v1449 = vcvt.s32.f32 %v1193
      %v1450 = vcvt.s32.f32 %v1194
      %v1451 = vcvt.s32.f32 %v1195
      %v1452 = vcvt.s32.f32 %v1196
      %v1453 = vcvt.s32.f32 %v1197
      %v1454 = vcvt.s32.f32 %v1198
      %v1455 = vcvt.s32.f32 %v1199
      %v1456 = vcvt.s32.f32 %v1200
      %v1457 = vcvt.s32.f32 %v1201
      %v1458 = vcvt.s32.f32 %v1202
      %v1459 = vcvt.s32.f32 %v1203
      %v1460 = vcvt.s32.f32 %v1204
      %v1461 = vcvt.s32.f32 %v1205
      %v1462 = vcvt.s32.f32 %v1206
      %v1463 = vcvt.s32.f32 %v1207
      %v1464 = vcvt.s32.f32 %v1208
      %v1465 = vcvt.s32.f32 %v1209
      %v1466 = vcvt.s32.f32 %v1210
      %v1467 = vcvt.s32.f32 %v1211
      %v1468 = vcvt.s32.f32 %v1212
      %v1469 = vcvt.s32.f32 %v1213
      %v1470 = vcvt.s32.f32 %v1214
      %v1471 = vcvt.s32.f32 %v1215
      %v1472 = vcvt.s32.f32 %v1216
      %v1473 = vcvt.s32.f32 %v1217
      %v1474 = vcvt.s32.f32 %v1218
      %v1475 = vcvt.s32.f32 %v1219
      %v1476 = vcvt.s32.f32 %v1220
      %v1477 = vcvt.s32.f32 %v1221
      %v1478 = vcvt.s32.f32 %v1222
      %v1479 = vld [vmem:[%s2] sm:$0xff]
      %v1480 = vld [vmem:[%s2 + $0x8] sm:$0xff]
      %v1481 = vld [vmem:[%s2 + $0x10] sm:$0xff]
      %v1482 = vld [vmem:[%s2 + $0x18] sm:$0xff]
      %v1483 = vld [vmem:[%s2 + $0x20] sm:$0xff]
      %v1484 = vld [vmem:[%s2 + $0x28] sm:$0xff]
      %v1485 = vld [vmem:[%s2 + $0x30] sm:$0xff]
      %v1486 = vld [vmem:[%s2 + $0x38] sm:$0xff]
      %v1487 = vld [vmem:[%s2 + $0x40] sm:$0xff]
      %v1488 = vld [vmem:[%s2 + $0x48] sm:$0xff]
      %v1489 = vld [vmem:[%s2 + $0x50] sm:$0xff]
      %v1490 = vld [vmem:[%s2 + $0x58] sm:$0xff]
      %v1491 = vld [vmem:[%s2 + $0x60] sm:$0xff]
      %v1492 = vld [vmem:[%s2 + $0x68] sm:$0xff]
      %v1493 = vld [vmem:[%s2 + $0x70] sm:$0xff]
      %v1494 = vld [vmem:[%s2 + $0x78] sm:$0xff]
      %v1495 = vld [vmem:[%s2 + $0x80] sm:$0xff]
      %v1496 = vld [vmem:[%s2 + $0x88] sm:$0xff]
      %v1497 = vld [vmem:[%s2 + $0x90] sm:$0xff]
      %v1498 = vld [vmem:[%s2 + $0x98] sm:$0xff]
      %v1499 = vld [vmem:[%s2 + $0xa0] sm:$0xff]
      %v1500 = vld [vmem:[%s2 + $0xa8] sm:$0xff]
      %v1501 = vld [vmem:[%s2 + $0xb0] sm:$0xff]
      %v1502 = vld [vmem:[%s2 + $0xb8] sm:$0xff]
      %v1503 = vld [vmem:[%s2 + $0xc0] sm:$0xff]
      %v1504 = vld [vmem:[%s2 + $0xc8] sm:$0xff]
      %v1505 = vld [vmem:[%s2 + $0xd0] sm:$0xff]
      %v1506 = vld [vmem:[%s2 + $0xd8] sm:$0xff]
      %v1507 = vld [vmem:[%s2 + $0xe0] sm:$0xff]
      %v1508 = vld [vmem:[%s2 + $0xe8] sm:$0xff]
      %v1509 = vld [vmem:[%s2 + $0xf0] sm:$0xff]
      %v1510 = vld [vmem:[%s2 + $0xf8] sm:$0xff]
      %1511 = vmatprep.subr.mxu0 0.0
      %1512 = vmatpush1.msra.mxu0 %v1494
      %1513 = vmatprep.subr.mxu0 0.0
      %1514 = vmatpush1.msra.mxu0 %v1493
      %1515 = vmatprep.subr.mxu0 0.0
      %1516 = vmatpush1.msra.mxu0 %v1492
      %1517 = vmatprep.subr.mxu0 0.0
      %1518 = vmatpush1.msra.mxu0 %v1491
      %1519 = vmatprep.subr.mxu0 0.0
      %1520 = vmatpush1.msra.mxu0 %v1490
      %1521 = vmatprep.subr.mxu0 0.0
      %1522 = vmatpush1.msra.mxu0 %v1489
      %1523 = vmatprep.subr.mxu0 0.0
      %1524 = vmatpush1.msra.mxu0 %v1488
      %1525 = vmatprep.subr.mxu0 0.0
      %1526 = vmatpush1.msra.mxu0 %v1487
      %1527 = vmatprep.subr.mxu0 0.0
      %1528 = vmatpush1.msra.mxu0 %v1486
      %1529 = vmatprep.subr.mxu0 0.0
      %1530 = vmatpush1.msra.mxu0 %v1485
      %1531 = vmatprep.subr.mxu0 0.0
      %1532 = vmatpush1.msra.mxu0 %v1484
      %1533 = vmatprep.subr.mxu0 0.0
      %1534 = vmatpush1.msra.mxu0 %v1483
      %1535 = vmatprep.subr.mxu0 0.0
      %1536 = vmatpush1.msra.mxu0 %v1482
      %1537 = vmatprep.subr.mxu0 0.0
      %1538 = vmatpush1.msra.mxu0 %v1481
      %1539 = vmatprep.subr.mxu0 0.0
      %1540 = vmatpush1.msra.mxu0 %v1480
      %1541 = vmatprep.subr.mxu0 0.0
      %1542 = vmatpush1.msra.mxu0 %v1479
      %1543 = vmatprep.subr.mxu0 0.0
      %1544 = vmatpush2.msra.mxu0 %v1510
      %1545 = vmatprep.subr.mxu0 0.0
      %1546 = vmatpush2.msra.mxu0 %v1509
      %1547 = vmatprep.subr.mxu0 0.0
      %1548 = vmatpush2.msra.mxu0 %v1508
      %1549 = vmatprep.subr.mxu0 0.0
      %1550 = vmatpush2.msra.mxu0 %v1507
      %1551 = vmatprep.subr.mxu0 0.0
      %1552 = vmatpush2.msra.mxu0 %v1506
      %1553 = vmatprep.subr.mxu0 0.0
      %1554 = vmatpush2.msra.mxu0 %v1505
      %1555 = vmatprep.subr.mxu0 0.0
      %1556 = vmatpush2.msra.mxu0 %v1504
      %1557 = vmatprep.subr.mxu0 0.0
      %1558 = vmatpush2.msra.mxu0 %v1503
      %1559 = vmatprep.subr.mxu0 0.0
      %1560 = vmatpush2.msra.mxu0 %v1502
      %1561 = vmatprep.subr.mxu0 0.0
      %1562 = vmatpush2.msra.mxu0 %v1501
      %1563 = vmatprep.subr.mxu0 0.0
      %1564 = vmatpush2.msra.mxu0 %v1500
      %1565 = vmatprep.subr.mxu0 0.0
      %1566 = vmatpush2.msra.mxu0 %v1499
      %1567 = vmatprep.subr.mxu0 0.0
      %1568 = vmatpush2.msra.mxu0 %v1498
      %1569 = vmatprep.subr.mxu0 0.0
      %1570 = vmatpush2.msra.mxu0 %v1497
      %1571 = vmatprep.subr.mxu0 0.0
      %1572 = vmatpush2.msra.mxu0 %v1496
      %1573 = vmatprep.subr.mxu0 0.0
      %1574 = vmatpush2.msra.mxu0 %v1495
      %1575 = vmatprep.mubr.f32.mxu0 %v1224
      %1576 = vmatmul.mubr.f32.gmra.mxu0 %v1223
      %v1577 = vpop.f32.mrf.mxu0
      %v1578 = vadd.f32 0.0, %v1577
      %v1579 = vpop.f32.mrf.mxu0
      %1580 = vmatprep.mubr.f32.mxu0 %v1226
      %1581 = vmatmul.mubr.f32.gmra.mxu0 %v1225
      %v1582 = vpop.f32.mrf.mxu0
      %v1583 = vadd.f32 0.0, %v1582
      %v1584 = vpop.f32.mrf.mxu0
      %1585 = vmatprep.mubr.f32.mxu0 %v1228
      %1586 = vmatmul.mubr.f32.gmra.mxu0 %v1227
      %v1587 = vpop.f32.mrf.mxu0
      %v1588 = vadd.f32 0.0, %v1587
      %v1589 = vpop.f32.mrf.mxu0
      %1590 = vmatprep.mubr.f32.mxu0 %v1230
      %1591 = vmatmul.mubr.f32.gmra.mxu0 %v1229
      %v1592 = vpop.f32.mrf.mxu0
      %v1593 = vadd.f32 0.0, %v1592
      %v1594 = vpop.f32.mrf.mxu0
      %1595 = vmatprep.mubr.f32.mxu0 %v1232
      %1596 = vmatmul.mubr.f32.gmra.mxu0 %v1231
      %v1597 = vpop.f32.mrf.mxu0
      %v1598 = vadd.f32 0.0, %v1597
      %v1599 = vpop.f32.mrf.mxu0
      %1600 = vmatprep.mubr.f32.mxu0 %v1234
      %1601 = vmatmul.mubr.f32.gmra.mxu0 %v1233
      %v1602 = vpop.f32.mrf.mxu0
      %v1603 = vadd.f32 0.0, %v1602
      %v1604 = vpop.f32.mrf.mxu0
      %1605 = vmatprep.mubr.f32.mxu0 %v1236
      %1606 = vmatmul.mubr.f32.gmra.mxu0 %v1235
      %v1607 = vpop.f32.mrf.mxu0
      %v1608 = vadd.f32 0.0, %v1607
      %v1609 = vpop.f32.mrf.mxu0
      %1610 = vmatprep.mubr.f32.mxu0 %v1238
      %1611 = vmatmul.mubr.f32.gmra.mxu0 %v1237
      %v1612 = vpop.f32.mrf.mxu0
      %v1613 = vadd.f32 0.0, %v1612
      %v1614 = vpop.f32.mrf.mxu0
      %1615 = vmatprep.mubr.f32.mxu0 %v1240
      %1616 = vmatmul.mubr.f32.gmra.mxu0 %v1239
      %v1617 = vpop.f32.mrf.mxu0
      %v1618 = vadd.f32 0.0, %v1617
      %v1619 = vpop.f32.mrf.mxu0
      %1620 = vmatprep.mubr.f32.mxu0 %v1242
      %1621 = vmatmul.mubr.f32.gmra.mxu0 %v1241
      %v1622 = vpop.f32.mrf.mxu0
      %v1623 = vadd.f32 0.0, %v1622
      %v1624 = vpop.f32.mrf.mxu0
      %1625 = vmatprep.mubr.f32.mxu0 %v1244
      %1626 = vmatmul.mubr.f32.gmra.mxu0 %v1243
      %v1627 = vpop.f32.mrf.mxu0
      %v1628 = vadd.f32 0.0, %v1627
      %v1629 = vpop.f32.mrf.mxu0
      %1630 = vmatprep.mubr.f32.mxu0 %v1246
      %1631 = vmatmul.mubr.f32.gmra.mxu0 %v1245
      %v1632 = vpop.f32.mrf.mxu0
      %v1633 = vadd.f32 0.0, %v1632
      %v1634 = vpop.f32.mrf.mxu0
      %1635 = vmatprep.mubr.f32.mxu0 %v1248
      %1636 = vmatmul.mubr.f32.gmra.mxu0 %v1247
      %v1637 = vpop.f32.mrf.mxu0
      %v1638 = vadd.f32 0.0, %v1637
      %v1639 = vpop.f32.mrf.mxu0
      %1640 = vmatprep.mubr.f32.mxu0 %v1250
      %1641 = vmatmul.mubr.f32.gmra.mxu0 %v1249
      %v1642 = vpop.f32.mrf.mxu0
      %v1643 = vadd.f32 0.0, %v1642
      %v1644 = vpop.f32.mrf.mxu0
      %1645 = vmatprep.mubr.f32.mxu0 %v1252
      %1646 = vmatmul.mubr.f32.gmra.mxu0 %v1251
      %v1647 = vpop.f32.mrf.mxu0
      %v1648 = vadd.f32 0.0, %v1647
      %v1649 = vpop.f32.mrf.mxu0
      %1650 = vmatprep.mubr.f32.mxu0 %v1254
      %1651 = vmatmul.mubr.f32.gmra.mxu0 %v1253
      %v1652 = vpop.f32.mrf.mxu0
      %v1653 = vadd.f32 0.0, %v1652
      %v1654 = vpop.f32.mrf.mxu0
      %1655 = vmatprep.mubr.f32.mxu0 %v1256
      %1656 = vmatmul.mubr.f32.gmra.mxu0 %v1255
      %v1657 = vpop.f32.mrf.mxu0
      %v1658 = vadd.f32 0.0, %v1657
      %v1659 = vpop.f32.mrf.mxu0
      %1660 = vmatprep.mubr.f32.mxu0 %v1258
      %1661 = vmatmul.mubr.f32.gmra.mxu0 %v1257
      %v1662 = vpop.f32.mrf.mxu0
      %v1663 = vadd.f32 0.0, %v1662
      %v1664 = vpop.f32.mrf.mxu0
      %1665 = vmatprep.mubr.f32.mxu0 %v1260
      %1666 = vmatmul.mubr.f32.gmra.mxu0 %v1259
      %v1667 = vpop.f32.mrf.mxu0
      %v1668 = vadd.f32 0.0, %v1667
      %v1669 = vpop.f32.mrf.mxu0
      %1670 = vmatprep.mubr.f32.mxu0 %v1262
      %1671 = vmatmul.mubr.f32.gmra.mxu0 %v1261
      %v1672 = vpop.f32.mrf.mxu0
      %v1673 = vadd.f32 0.0, %v1672
      %v1674 = vpop.f32.mrf.mxu0
      %1675 = vmatprep.mubr.f32.mxu0 %v1264
      %1676 = vmatmul.mubr.f32.gmra.mxu0 %v1263
      %v1677 = vpop.f32.mrf.mxu0
      %v1678 = vadd.f32 0.0, %v1677
      %v1679 = vpop.f32.mrf.mxu0
      %1680 = vmatprep.mubr.f32.mxu0 %v1266
      %1681 = vmatmul.mubr.f32.gmra.mxu0 %v1265
      %v1682 = vpop.f32.mrf.mxu0
      %v1683 = vadd.f32 0.0, %v1682
      %v1684 = vpop.f32.mrf.mxu0
      %1685 = vmatprep.mubr.f32.mxu0 %v1268
      %1686 = vmatmul.mubr.f32.gmra.mxu0 %v1267
      %v1687 = vpop.f32.mrf.mxu0
      %v1688 = vadd.f32 0.0, %v1687
      %v1689 = vpop.f32.mrf.mxu0
      %1690 = vmatprep.mubr.f32.mxu0 %v1270
      %1691 = vmatmul.mubr.f32.gmra.mxu0 %v1269
      %v1692 = vpop.f32.mrf.mxu0
      %v1693 = vadd.f32 0.0, %v1692
      %v1694 = vpop.f32.mrf.mxu0
      %1695 = vmatprep.mubr.f32.mxu0 %v1272
      %1696 = vmatmul.mubr.f32.gmra.mxu0 %v1271
      %v1697 = vpop.f32.mrf.mxu0
      %v1698 = vadd.f32 0.0, %v1697
      %v1699 = vpop.f32.mrf.mxu0
      %1700 = vmatprep.mubr.f32.mxu0 %v1274
      %1701 = vmatmul.mubr.f32.gmra.mxu0 %v1273
      %v1702 = vpop.f32.mrf.mxu0
      %v1703 = vadd.f32 0.0, %v1702
      %v1704 = vpop.f32.mrf.mxu0
      %1705 = vmatprep.mubr.f32.mxu0 %v1276
      %1706 = vmatmul.mubr.f32.gmra.mxu0 %v1275
      %v1707 = vpop.f32.mrf.mxu0
      %v1708 = vadd.f32 0.0, %v1707
      %v1709 = vpop.f32.mrf.mxu0
      %1710 = vmatprep.mubr.f32.mxu0 %v1278
      %1711 = vmatmul.mubr.f32.gmra.mxu0 %v1277
      %v1712 = vpop.f32.mrf.mxu0
      %v1713 = vadd.f32 0.0, %v1712
      %v1714 = vpop.f32.mrf.mxu0
      %1715 = vmatprep.mubr.f32.mxu0 %v1280
      %1716 = vmatmul.mubr.f32.gmra.mxu0 %v1279
      %v1717 = vpop.f32.mrf.mxu0
      %v1718 = vadd.f32 0.0, %v1717
      %v1719 = vpop.f32.mrf.mxu0
      %1720 = vmatprep.mubr.f32.mxu0 %v1282
      %1721 = vmatmul.mubr.f32.gmra.mxu0 %v1281
      %v1722 = vpop.f32.mrf.mxu0
      %v1723 = vadd.f32 0.0, %v1722
      %v1724 = vpop.f32.mrf.mxu0
      %1725 = vmatprep.mubr.f32.mxu0 %v1284
      %1726 = vmatmul.mubr.f32.gmra.mxu0 %v1283
      %v1727 = vpop.f32.mrf.mxu0
      %v1728 = vadd.f32 0.0, %v1727
      %v1729 = vpop.f32.mrf.mxu0
      %1730 = vmatprep.mubr.f32.mxu0 %v1286
      %1731 = vmatmul.mubr.f32.gmra.mxu0 %v1285
      %v1732 = vpop.f32.mrf.mxu0
      %v1733 = vadd.f32 0.0, %v1732
      %v1734 = vpop.f32.mrf.mxu0
      %1735 = vmatprep.mubr.f32.mxu0 %v1288
      %1736 = vmatmul.mubr.f32.gmra.mxu0 %v1287
      %v1737 = vpop.f32.mrf.mxu0
      %v1738 = vadd.f32 0.0, %v1737
      %v1739 = vpop.f32.mrf.mxu0
      %1740 = vmatprep.mubr.f32.mxu0 %v1290
      %1741 = vmatmul.mubr.f32.gmra.mxu0 %v1289
      %v1742 = vpop.f32.mrf.mxu0
      %v1743 = vadd.f32 0.0, %v1742
      %v1744 = vpop.f32.mrf.mxu0
      %1745 = vmatprep.mubr.f32.mxu0 %v1292
      %1746 = vmatmul.mubr.f32.gmra.mxu0 %v1291
      %v1747 = vpop.f32.mrf.mxu0
      %v1748 = vadd.f32 0.0, %v1747
      %v1749 = vpop.f32.mrf.mxu0
      %1750 = vmatprep.mubr.f32.mxu0 %v1294
      %1751 = vmatmul.mubr.f32.gmra.mxu0 %v1293
      %v1752 = vpop.f32.mrf.mxu0
      %v1753 = vadd.f32 0.0, %v1752
      %v1754 = vpop.f32.mrf.mxu0
      %1755 = vmatprep.mubr.f32.mxu0 %v1296
      %1756 = vmatmul.mubr.f32.gmra.mxu0 %v1295
      %v1757 = vpop.f32.mrf.mxu0
      %v1758 = vadd.f32 0.0, %v1757
      %v1759 = vpop.f32.mrf.mxu0
      %1760 = vmatprep.mubr.f32.mxu0 %v1298
      %1761 = vmatmul.mubr.f32.gmra.mxu0 %v1297
      %v1762 = vpop.f32.mrf.mxu0
      %v1763 = vadd.f32 0.0, %v1762
      %v1764 = vpop.f32.mrf.mxu0
      %1765 = vmatprep.mubr.f32.mxu0 %v1300
      %1766 = vmatmul.mubr.f32.gmra.mxu0 %v1299
      %v1767 = vpop.f32.mrf.mxu0
      %v1768 = vadd.f32 0.0, %v1767
      %v1769 = vpop.f32.mrf.mxu0
      %1770 = vmatprep.mubr.f32.mxu0 %v1302
      %1771 = vmatmul.mubr.f32.gmra.mxu0 %v1301
      %v1772 = vpop.f32.mrf.mxu0
      %v1773 = vadd.f32 0.0, %v1772
      %v1774 = vpop.f32.mrf.mxu0
      %1775 = vmatprep.mubr.f32.mxu0 %v1304
      %1776 = vmatmul.mubr.f32.gmra.mxu0 %v1303
      %v1777 = vpop.f32.mrf.mxu0
      %v1778 = vadd.f32 0.0, %v1777
      %v1779 = vpop.f32.mrf.mxu0
      %1780 = vmatprep.mubr.f32.mxu0 %v1306
      %1781 = vmatmul.mubr.f32.gmra.mxu0 %v1305
      %v1782 = vpop.f32.mrf.mxu0
      %v1783 = vadd.f32 0.0, %v1782
      %v1784 = vpop.f32.mrf.mxu0
      %1785 = vmatprep.mubr.f32.mxu0 %v1308
      %1786 = vmatmul.mubr.f32.gmra.mxu0 %v1307
      %v1787 = vpop.f32.mrf.mxu0
      %v1788 = vadd.f32 0.0, %v1787
      %v1789 = vpop.f32.mrf.mxu0
      %1790 = vmatprep.mubr.f32.mxu0 %v1310
      %1791 = vmatmul.mubr.f32.gmra.mxu0 %v1309
      %v1792 = vpop.f32.mrf.mxu0
      %v1793 = vadd.f32 0.0, %v1792
      %v1794 = vpop.f32.mrf.mxu0
      %1795 = vmatprep.mubr.f32.mxu0 %v1312
      %1796 = vmatmul.mubr.f32.gmra.mxu0 %v1311
      %v1797 = vpop.f32.mrf.mxu0
      %v1798 = vadd.f32 0.0, %v1797
      %v1799 = vpop.f32.mrf.mxu0
      %1800 = vmatprep.mubr.f32.mxu0 %v1314
      %1801 = vmatmul.mubr.f32.gmra.mxu0 %v1313
      %v1802 = vpop.f32.mrf.mxu0
      %v1803 = vadd.f32 0.0, %v1802
      %v1804 = vpop.f32.mrf.mxu0
      %1805 = vmatprep.mubr.f32.mxu0 %v1316
      %1806 = vmatmul.mubr.f32.gmra.mxu0 %v1315
      %v1807 = vpop.f32.mrf.mxu0
      %v1808 = vadd.f32 0.0, %v1807
      %v1809 = vpop.f32.mrf.mxu0
      %1810 = vmatprep.mubr.f32.mxu0 %v1318
      %1811 = vmatmul.mubr.f32.gmra.mxu0 %v1317
      %v1812 = vpop.f32.mrf.mxu0
      %v1813 = vadd.f32 0.0, %v1812
      %v1814 = vpop.f32.mrf.mxu0
      %1815 = vmatprep.mubr.f32.mxu0 %v1320
      %1816 = vmatmul.mubr.f32.gmra.mxu0 %v1319
      %v1817 = vpop.f32.mrf.mxu0
      %v1818 = vadd.f32 0.0, %v1817
      %v1819 = vpop.f32.mrf.mxu0
      %1820 = vmatprep.mubr.f32.mxu0 %v1322
      %1821 = vmatmul.mubr.f32.gmra.mxu0 %v1321
      %v1822 = vpop.f32.mrf.mxu0
      %v1823 = vadd.f32 0.0, %v1822
      %v1824 = vpop.f32.mrf.mxu0
      %1825 = vmatprep.mubr.f32.mxu0 %v1324
      %1826 = vmatmul.mubr.f32.gmra.mxu0 %v1323
      %v1827 = vpop.f32.mrf.mxu0
      %v1828 = vadd.f32 0.0, %v1827
      %v1829 = vpop.f32.mrf.mxu0
      %1830 = vmatprep.mubr.f32.mxu0 %v1326
      %1831 = vmatmul.mubr.f32.gmra.mxu0 %v1325
      %v1832 = vpop.f32.mrf.mxu0
      %v1833 = vadd.f32 0.0, %v1832
      %v1834 = vpop.f32.mrf.mxu0
      %1835 = vmatprep.mubr.f32.mxu0 %v1328
      %1836 = vmatmul.mubr.f32.gmra.mxu0 %v1327
      %v1837 = vpop.f32.mrf.mxu0
      %v1838 = vadd.f32 0.0, %v1837
      %v1839 = vpop.f32.mrf.mxu0
      %1840 = vmatprep.mubr.f32.mxu0 %v1330
      %1841 = vmatmul.mubr.f32.gmra.mxu0 %v1329
      %v1842 = vpop.f32.mrf.mxu0
      %v1843 = vadd.f32 0.0, %v1842
      %v1844 = vpop.f32.mrf.mxu0
      %1845 = vmatprep.mubr.f32.mxu0 %v1332
      %1846 = vmatmul.mubr.f32.gmra.mxu0 %v1331
      %v1847 = vpop.f32.mrf.mxu0
      %v1848 = vadd.f32 0.0, %v1847
      %v1849 = vpop.f32.mrf.mxu0
      %1850 = vmatprep.mubr.f32.mxu0 %v1334
      %1851 = vmatmul.mubr.f32.gmra.mxu0 %v1333
      %v1852 = vpop.f32.mrf.mxu0
      %v1853 = vadd.f32 0.0, %v1852
      %v1854 = vpop.f32.mrf.mxu0
      %1855 = vmatprep.mubr.f32.mxu0 %v1336
      %1856 = vmatmul.mubr.f32.gmra.mxu0 %v1335
      %v1857 = vpop.f32.mrf.mxu0
      %v1858 = vadd.f32 0.0, %v1857
      %v1859 = vpop.f32.mrf.mxu0
      %1860 = vmatprep.mubr.f32.mxu0 %v1338
      %1861 = vmatmul.mubr.f32.gmra.mxu0 %v1337
      %v1862 = vpop.f32.mrf.mxu0
      %v1863 = vadd.f32 0.0, %v1862
      %v1864 = vpop.f32.mrf.mxu0
      %1865 = vmatprep.mubr.f32.mxu0 %v1340
      %1866 = vmatmul.mubr.f32.gmra.mxu0 %v1339
      %v1867 = vpop.f32.mrf.mxu0
      %v1868 = vadd.f32 0.0, %v1867
      %v1869 = vpop.f32.mrf.mxu0
      %1870 = vmatprep.mubr.f32.mxu0 %v1342
      %1871 = vmatmul.mubr.f32.gmra.mxu0 %v1341
      %v1872 = vpop.f32.mrf.mxu0
      %v1873 = vadd.f32 0.0, %v1872
      %v1874 = vpop.f32.mrf.mxu0
      %1875 = vmatprep.mubr.f32.mxu0 %v1344
      %1876 = vmatmul.mubr.f32.gmra.mxu0 %v1343
      %v1877 = vpop.f32.mrf.mxu0
      %v1878 = vadd.f32 0.0, %v1877
      %v1879 = vpop.f32.mrf.mxu0
      %1880 = vmatprep.mubr.f32.mxu0 %v1346
      %1881 = vmatmul.mubr.f32.gmra.mxu0 %v1345
      %v1882 = vpop.f32.mrf.mxu0
      %v1883 = vadd.f32 0.0, %v1882
      %v1884 = vpop.f32.mrf.mxu0
      %1885 = vmatprep.mubr.f32.mxu0 %v1348
      %1886 = vmatmul.mubr.f32.gmra.mxu0 %v1347
      %v1887 = vpop.f32.mrf.mxu0
      %v1888 = vadd.f32 0.0, %v1887
      %v1889 = vpop.f32.mrf.mxu0
      %1890 = vmatprep.mubr.f32.mxu0 %v1350
      %1891 = vmatmul.mubr.f32.gmra.mxu0 %v1349
      %v1892 = vpop.f32.mrf.mxu0
      %v1893 = vadd.f32 0.0, %v1892
      %v1894 = vpop.f32.mrf.mxu0
      %1895 = vmatprep.mubr.f32.mxu0 %v1352
      %1896 = vmatmul.mubr.f32.gmra.mxu0 %v1351
      %v1897 = vpop.f32.mrf.mxu0
      %v1898 = vadd.f32 0.0, %v1897
      %v1899 = vpop.f32.mrf.mxu0
      %1900 = vmatprep.mubr.f32.mxu0 %v1354
      %1901 = vmatmul.mubr.f32.gmra.mxu0 %v1353
      %v1902 = vpop.f32.mrf.mxu0
      %v1903 = vadd.f32 0.0, %v1902
      %v1904 = vpop.f32.mrf.mxu0
      %1905 = vmatprep.mubr.f32.mxu0 %v1356
      %1906 = vmatmul.mubr.f32.gmra.mxu0 %v1355
      %v1907 = vpop.f32.mrf.mxu0
      %v1908 = vadd.f32 0.0, %v1907
      %v1909 = vpop.f32.mrf.mxu0
      %1910 = vmatprep.mubr.f32.mxu0 %v1358
      %1911 = vmatmul.mubr.f32.gmra.mxu0 %v1357
      %v1912 = vpop.f32.mrf.mxu0
      %v1913 = vadd.f32 0.0, %v1912
      %v1914 = vpop.f32.mrf.mxu0
      %1915 = vmatprep.mubr.f32.mxu0 %v1360
      %1916 = vmatmul.mubr.f32.gmra.mxu0 %v1359
      %v1917 = vpop.f32.mrf.mxu0
      %v1918 = vadd.f32 0.0, %v1917
      %v1919 = vpop.f32.mrf.mxu0
      %1920 = vmatprep.mubr.f32.mxu0 %v1362
      %1921 = vmatmul.mubr.f32.gmra.mxu0 %v1361
      %v1922 = vpop.f32.mrf.mxu0
      %v1923 = vadd.f32 0.0, %v1922
      %v1924 = vpop.f32.mrf.mxu0
      %1925 = vmatprep.mubr.f32.mxu0 %v1364
      %1926 = vmatmul.mubr.f32.gmra.mxu0 %v1363
      %v1927 = vpop.f32.mrf.mxu0
      %v1928 = vadd.f32 0.0, %v1927
      %v1929 = vpop.f32.mrf.mxu0
      %1930 = vmatprep.mubr.f32.mxu0 %v1366
      %1931 = vmatmul.mubr.f32.gmra.mxu0 %v1365
      %v1932 = vpop.f32.mrf.mxu0
      %v1933 = vadd.f32 0.0, %v1932
      %v1934 = vpop.f32.mrf.mxu0
      %1935 = vmatprep.mubr.f32.mxu0 %v1368
      %1936 = vmatmul.mubr.f32.gmra.mxu0 %v1367
      %v1937 = vpop.f32.mrf.mxu0
      %v1938 = vadd.f32 0.0, %v1937
      %v1939 = vpop.f32.mrf.mxu0
      %1940 = vmatprep.mubr.f32.mxu0 %v1370
      %1941 = vmatmul.mubr.f32.gmra.mxu0 %v1369
      %v1942 = vpop.f32.mrf.mxu0
      %v1943 = vadd.f32 0.0, %v1942
      %v1944 = vpop.f32.mrf.mxu0
      %1945 = vmatprep.mubr.f32.mxu0 %v1372
      %1946 = vmatmul.mubr.f32.gmra.mxu0 %v1371
      %v1947 = vpop.f32.mrf.mxu0
      %v1948 = vadd.f32 0.0, %v1947
      %v1949 = vpop.f32.mrf.mxu0
      %1950 = vmatprep.mubr.f32.mxu0 %v1374
      %1951 = vmatmul.mubr.f32.gmra.mxu0 %v1373
      %v1952 = vpop.f32.mrf.mxu0
      %v1953 = vadd.f32 0.0, %v1952
      %v1954 = vpop.f32.mrf.mxu0
      %1955 = vmatprep.mubr.f32.mxu0 %v1376
      %1956 = vmatmul.mubr.f32.gmra.mxu0 %v1375
      %v1957 = vpop.f32.mrf.mxu0
      %v1958 = vadd.f32 0.0, %v1957
      %v1959 = vpop.f32.mrf.mxu0
      %1960 = vmatprep.mubr.f32.mxu0 %v1378
      %1961 = vmatmul.mubr.f32.gmra.mxu0 %v1377
      %v1962 = vpop.f32.mrf.mxu0
      %v1963 = vadd.f32 0.0, %v1962
      %v1964 = vpop.f32.mrf.mxu0
      %1965 = vmatprep.mubr.f32.mxu0 %v1380
      %1966 = vmatmul.mubr.f32.gmra.mxu0 %v1379
      %v1967 = vpop.f32.mrf.mxu0
      %v1968 = vadd.f32 0.0, %v1967
      %v1969 = vpop.f32.mrf.mxu0
      %1970 = vmatprep.mubr.f32.mxu0 %v1382
      %1971 = vmatmul.mubr.f32.gmra.mxu0 %v1381
      %v1972 = vpop.f32.mrf.mxu0
      %v1973 = vadd.f32 0.0, %v1972
      %v1974 = vpop.f32.mrf.mxu0
      %1975 = vmatprep.mubr.f32.mxu0 %v1384
      %1976 = vmatmul.mubr.f32.gmra.mxu0 %v1383
      %v1977 = vpop.f32.mrf.mxu0
      %v1978 = vadd.f32 0.0, %v1977
      %v1979 = vpop.f32.mrf.mxu0
      %1980 = vmatprep.mubr.f32.mxu0 %v1386
      %1981 = vmatmul.mubr.f32.gmra.mxu0 %v1385
      %v1982 = vpop.f32.mrf.mxu0
      %v1983 = vadd.f32 0.0, %v1982
      %v1984 = vpop.f32.mrf.mxu0
      %1985 = vmatprep.mubr.f32.mxu0 %v1388
      %1986 = vmatmul.mubr.f32.gmra.mxu0 %v1387
      %v1987 = vpop.f32.mrf.mxu0
      %v1988 = vadd.f32 0.0, %v1987
      %v1989 = vpop.f32.mrf.mxu0
      %1990 = vmatprep.mubr.f32.mxu0 %v1390
      %1991 = vmatmul.mubr.f32.gmra.mxu0 %v1389
      %v1992 = vpop.f32.mrf.mxu0
      %v1993 = vadd.f32 0.0, %v1992
      %v1994 = vpop.f32.mrf.mxu0
      %1995 = vmatprep.mubr.f32.mxu0 %v1392
      %1996 = vmatmul.mubr.f32.gmra.mxu0 %v1391
      %v1997 = vpop.f32.mrf.mxu0
      %v1998 = vadd.f32 0.0, %v1997
      %v1999 = vpop.f32.mrf.mxu0
      %2000 = vmatprep.mubr.f32.mxu0 %v1394
      %2001 = vmatmul.mubr.f32.gmra.mxu0 %v1393
      %v2002 = vpop.f32.mrf.mxu0
      %v2003 = vadd.f32 0.0, %v2002
      %v2004 = vpop.f32.mrf.mxu0
      %2005 = vmatprep.mubr.f32.mxu0 %v1396
      %2006 = vmatmul.mubr.f32.gmra.mxu0 %v1395
      %v2007 = vpop.f32.mrf.mxu0
      %v2008 = vadd.f32 0.0, %v2007
      %v2009 = vpop.f32.mrf.mxu0
      %2010 = vmatprep.mubr.f32.mxu0 %v1398
      %2011 = vmatmul.mubr.f32.gmra.mxu0 %v1397
      %v2012 = vpop.f32.mrf.mxu0
      %v2013 = vadd.f32 0.0, %v2012
      %v2014 = vpop.f32.mrf.mxu0
      %2015 = vmatprep.mubr.f32.mxu0 %v1400
      %2016 = vmatmul.mubr.f32.gmra.mxu0 %v1399
      %v2017 = vpop.f32.mrf.mxu0
      %v2018 = vadd.f32 0.0, %v2017
      %v2019 = vpop.f32.mrf.mxu0
      %2020 = vmatprep.mubr.f32.mxu0 %v1402
      %2021 = vmatmul.mubr.f32.gmra.mxu0 %v1401
      %v2022 = vpop.f32.mrf.mxu0
      %v2023 = vadd.f32 0.0, %v2022
      %v2024 = vpop.f32.mrf.mxu0
      %2025 = vmatprep.mubr.f32.mxu0 %v1404
      %2026 = vmatmul.mubr.f32.gmra.mxu0 %v1403
      %v2027 = vpop.f32.mrf.mxu0
      %v2028 = vadd.f32 0.0, %v2027
      %v2029 = vpop.f32.mrf.mxu0
      %2030 = vmatprep.mubr.f32.mxu0 %v1406
      %2031 = vmatmul.mubr.f32.gmra.mxu0 %v1405
      %v2032 = vpop.f32.mrf.mxu0
      %v2033 = vadd.f32 0.0, %v2032
      %v2034 = vpop.f32.mrf.mxu0
      %2035 = vmatprep.mubr.f32.mxu0 %v1408
      %2036 = vmatmul.mubr.f32.gmra.mxu0 %v1407
      %v2037 = vpop.f32.mrf.mxu0
      %v2038 = vadd.f32 0.0, %v2037
      %v2039 = vpop.f32.mrf.mxu0
      %2040 = vmatprep.mubr.f32.mxu0 %v1410
      %2041 = vmatmul.mubr.f32.gmra.mxu0 %v1409
      %v2042 = vpop.f32.mrf.mxu0
      %v2043 = vadd.f32 0.0, %v2042
      %v2044 = vpop.f32.mrf.mxu0
      %2045 = vmatprep.mubr.f32.mxu0 %v1412
      %2046 = vmatmul.mubr.f32.gmra.mxu0 %v1411
      %v2047 = vpop.f32.mrf.mxu0
      %v2048 = vadd.f32 0.0, %v2047
      %v2049 = vpop.f32.mrf.mxu0
      %2050 = vmatprep.mubr.f32.mxu0 %v1414
      %2051 = vmatmul.mubr.f32.gmra.mxu0 %v1413
      %v2052 = vpop.f32.mrf.mxu0
      %v2053 = vadd.f32 0.0, %v2052
      %v2054 = vpop.f32.mrf.mxu0
      %2055 = vmatprep.mubr.f32.mxu0 %v1416
      %2056 = vmatmul.mubr.f32.gmra.mxu0 %v1415
      %v2057 = vpop.f32.mrf.mxu0
      %v2058 = vadd.f32 0.0, %v2057
      %v2059 = vpop.f32.mrf.mxu0
      %2060 = vmatprep.mubr.f32.mxu0 %v1418
      %2061 = vmatmul.mubr.f32.gmra.mxu0 %v1417
      %v2062 = vpop.f32.mrf.mxu0
      %v2063 = vadd.f32 0.0, %v2062
      %v2064 = vpop.f32.mrf.mxu0
      %2065 = vmatprep.mubr.f32.mxu0 %v1420
      %2066 = vmatmul.mubr.f32.gmra.mxu0 %v1419
      %v2067 = vpop.f32.mrf.mxu0
      %v2068 = vadd.f32 0.0, %v2067
      %v2069 = vpop.f32.mrf.mxu0
      %2070 = vmatprep.mubr.f32.mxu0 %v1422
      %2071 = vmatmul.mubr.f32.gmra.mxu0 %v1421
      %v2072 = vpop.f32.mrf.mxu0
      %v2073 = vadd.f32 0.0, %v2072
      %v2074 = vpop.f32.mrf.mxu0
      %2075 = vmatprep.mubr.f32.mxu0 %v1424
      %2076 = vmatmul.mubr.f32.gmra.mxu0 %v1423
      %v2077 = vpop.f32.mrf.mxu0
      %v2078 = vadd.f32 0.0, %v2077
      %v2079 = vpop.f32.mrf.mxu0
      %2080 = vmatprep.mubr.f32.mxu0 %v1426
      %2081 = vmatmul.mubr.f32.gmra.mxu0 %v1425
      %v2082 = vpop.f32.mrf.mxu0
      %v2083 = vadd.f32 0.0, %v2082
      %v2084 = vpop.f32.mrf.mxu0
      %2085 = vmatprep.mubr.f32.mxu0 %v1428
      %2086 = vmatmul.mubr.f32.gmra.mxu0 %v1427
      %v2087 = vpop.f32.mrf.mxu0
      %v2088 = vadd.f32 0.0, %v2087
      %v2089 = vpop.f32.mrf.mxu0
      %2090 = vmatprep.mubr.f32.mxu0 %v1430
      %2091 = vmatmul.mubr.f32.gmra.mxu0 %v1429
      %v2092 = vpop.f32.mrf.mxu0
      %v2093 = vadd.f32 0.0, %v2092
      %v2094 = vpop.f32.mrf.mxu0
      %2095 = vmatprep.mubr.f32.mxu0 %v1432
      %2096 = vmatmul.mubr.f32.gmra.mxu0 %v1431
      %v2097 = vpop.f32.mrf.mxu0
      %v2098 = vadd.f32 0.0, %v2097
      %v2099 = vpop.f32.mrf.mxu0
      %2100 = vmatprep.mubr.f32.mxu0 %v1434
      %2101 = vmatmul.mubr.f32.gmra.mxu0 %v1433
      %v2102 = vpop.f32.mrf.mxu0
      %v2103 = vadd.f32 0.0, %v2102
      %v2104 = vpop.f32.mrf.mxu0
      %2105 = vmatprep.mubr.f32.mxu0 %v1436
      %2106 = vmatmul.mubr.f32.gmra.mxu0 %v1435
      %v2107 = vpop.f32.mrf.mxu0
      %v2108 = vadd.f32 0.0, %v2107
      %v2109 = vpop.f32.mrf.mxu0
      %2110 = vmatprep.mubr.f32.mxu0 %v1438
      %2111 = vmatmul.mubr.f32.gmra.mxu0 %v1437
      %v2112 = vpop.f32.mrf.mxu0
      %v2113 = vadd.f32 0.0, %v2112
      %v2114 = vpop.f32.mrf.mxu0
      %2115 = vmatprep.mubr.f32.mxu0 %v1440
      %2116 = vmatmul.mubr.f32.gmra.mxu0 %v1439
      %v2117 = vpop.f32.mrf.mxu0
      %v2118 = vadd.f32 0.0, %v2117
      %v2119 = vpop.f32.mrf.mxu0
      %2120 = vmatprep.mubr.f32.mxu0 %v1442
      %2121 = vmatmul.mubr.f32.gmra.mxu0 %v1441
      %v2122 = vpop.f32.mrf.mxu0
      %v2123 = vadd.f32 0.0, %v2122
      %v2124 = vpop.f32.mrf.mxu0
      %2125 = vmatprep.mubr.f32.mxu0 %v1444
      %2126 = vmatmul.mubr.f32.gmra.mxu0 %v1443
      %v2127 = vpop.f32.mrf.mxu0
      %v2128 = vadd.f32 0.0, %v2127
      %v2129 = vpop.f32.mrf.mxu0
      %2130 = vmatprep.mubr.f32.mxu0 %v1446
      %2131 = vmatmul.mubr.f32.gmra.mxu0 %v1445
      %v2132 = vpop.f32.mrf.mxu0
      %v2133 = vadd.f32 0.0, %v2132
      %v2134 = vpop.f32.mrf.mxu0
      %2135 = vmatprep.mubr.f32.mxu0 %v1448
      %2136 = vmatmul.mubr.f32.gmra.mxu0 %v1447
      %v2137 = vpop.f32.mrf.mxu0
      %v2138 = vadd.f32 0.0, %v2137
      %v2139 = vpop.f32.mrf.mxu0
      %2140 = vmatprep.mubr.f32.mxu0 %v1450
      %2141 = vmatmul.mubr.f32.gmra.mxu0 %v1449
      %v2142 = vpop.f32.mrf.mxu0
      %v2143 = vadd.f32 0.0, %v2142
      %v2144 = vpop.f32.mrf.mxu0
      %2145 = vmatprep.mubr.f32.mxu0 %v1452
      %2146 = vmatmul.mubr.f32.gmra.mxu0 %v1451
      %v2147 = vpop.f32.mrf.mxu0
      %v2148 = vadd.f32 0.0, %v2147
      %v2149 = vpop.f32.mrf.mxu0
      %2150 = vmatprep.mubr.f32.mxu0 %v1454
      %2151 = vmatmul.mubr.f32.gmra.mxu0 %v1453
      %v2152 = vpop.f32.mrf.mxu0
      %v2153 = vadd.f32 0.0, %v2152
      %v2154 = vpop.f32.mrf.mxu0
      %2155 = vmatprep.mubr.f32.mxu0 %v1456
      %2156 = vmatmul.mubr.f32.gmra.mxu0 %v1455
      %v2157 = vpop.f32.mrf.mxu0
      %v2158 = vadd.f32 0.0, %v2157
      %v2159 = vpop.f32.mrf.mxu0
      %2160 = vmatprep.mubr.f32.mxu0 %v1458
      %2161 = vmatmul.mubr.f32.gmra.mxu0 %v1457
      %v2162 = vpop.f32.mrf.mxu0
      %v2163 = vadd.f32 0.0, %v2162
      %v2164 = vpop.f32.mrf.mxu0
      %2165 = vmatprep.mubr.f32.mxu0 %v1460
      %2166 = vmatmul.mubr.f32.gmra.mxu0 %v1459
      %v2167 = vpop.f32.mrf.mxu0
      %v2168 = vadd.f32 0.0, %v2167
      %v2169 = vpop.f32.mrf.mxu0
      %2170 = vmatprep.mubr.f32.mxu0 %v1462
      %2171 = vmatmul.mubr.f32.gmra.mxu0 %v1461
      %v2172 = vpop.f32.mrf.mxu0
      %v2173 = vadd.f32 0.0, %v2172
      %v2174 = vpop.f32.mrf.mxu0
      %2175 = vmatprep.mubr.f32.mxu0 %v1464
      %2176 = vmatmul.mubr.f32.gmra.mxu0 %v1463
      %v2177 = vpop.f32.mrf.mxu0
      %v2178 = vadd.f32 0.0, %v2177
      %v2179 = vpop.f32.mrf.mxu0
      %2180 = vmatprep.mubr.f32.mxu0 %v1466
      %2181 = vmatmul.mubr.f32.gmra.mxu0 %v1465
      %v2182 = vpop.f32.mrf.mxu0
      %v2183 = vadd.f32 0.0, %v2182
      %v2184 = vpop.f32.mrf.mxu0
      %2185 = vmatprep.mubr.f32.mxu0 %v1468
      %2186 = vmatmul.mubr.f32.gmra.mxu0 %v1467
      %v2187 = vpop.f32.mrf.mxu0
      %v2188 = vadd.f32 0.0, %v2187
      %v2189 = vpop.f32.mrf.mxu0
      %2190 = vmatprep.mubr.f32.mxu0 %v1470
      %2191 = vmatmul.mubr.f32.gmra.mxu0 %v1469
      %v2192 = vpop.f32.mrf.mxu0
      %v2193 = vadd.f32 0.0, %v2192
      %v2194 = vpop.f32.mrf.mxu0
      %2195 = vmatprep.mubr.f32.mxu0 %v1472
      %2196 = vmatmul.mubr.f32.gmra.mxu0 %v1471
      %v2197 = vpop.f32.mrf.mxu0
      %v2198 = vadd.f32 0.0, %v2197
      %v2199 = vpop.f32.mrf.mxu0
      %2200 = vmatprep.mubr.f32.mxu0 %v1474
      %2201 = vmatmul.mubr.f32.gmra.mxu0 %v1473
      %v2202 = vpop.f32.mrf.mxu0
      %v2203 = vadd.f32 0.0, %v2202
      %v2204 = vpop.f32.mrf.mxu0
      %2205 = vmatprep.mubr.f32.mxu0 %v1476
      %2206 = vmatmul.mubr.f32.gmra.mxu0 %v1475
      %v2207 = vpop.f32.mrf.mxu0
      %v2208 = vadd.f32 0.0, %v2207
      %v2209 = vpop.f32.mrf.mxu0
      %2210 = vmatprep.mubr.f32.mxu0 %v1478
      %2211 = vmatmul.mubr.f32.gmra.mxu0 %v1477
      %v2212 = vpop.f32.mrf.mxu0
      %v2213 = vadd.f32 0.0, %v2212
      %v2214 = vpop.f32.mrf.mxu0
      %2215 = vdwg.mxu0
      %v2216 = vld [vmem:[%s182] sm:$0xff]
      %v2217 = vld [vmem:[%s182 + $0x8] sm:$0xff]
      %v2218 = vld [vmem:[%s182 + $0x10] sm:$0xff]
      %v2219 = vld [vmem:[%s182 + $0x18] sm:$0xff]
      %v2220 = vld [vmem:[%s182 + $0x20] sm:$0xff]
      %v2221 = vld [vmem:[%s182 + $0x28] sm:$0xff]
      %v2222 = vld [vmem:[%s182 + $0x30] sm:$0xff]
      %v2223 = vld [vmem:[%s182 + $0x38] sm:$0xff]
      %v2224 = vld [vmem:[%s182 + $0x40] sm:$0xff]
      %v2225 = vld [vmem:[%s182 + $0x48] sm:$0xff]
      %v2226 = vld [vmem:[%s182 + $0x50] sm:$0xff]
      %v2227 = vld [vmem:[%s182 + $0x58] sm:$0xff]
      %v2228 = vld [vmem:[%s182 + $0x60] sm:$0xff]
      %v2229 = vld [vmem:[%s182 + $0x68] sm:$0xff]
      %v2230 = vld [vmem:[%s182 + $0x70] sm:$0xff]
      %v2231 = vld [vmem:[%s182 + $0x78] sm:$0xff]
      %v2232 = vld [vmem:[%s182 + $0x80] sm:$0xff]
      %v2233 = vld [vmem:[%s182 + $0x88] sm:$0xff]
      %v2234 = vld [vmem:[%s182 + $0x90] sm:$0xff]
      %v2235 = vld [vmem:[%s182 + $0x98] sm:$0xff]
      %v2236 = vld [vmem:[%s182 + $0xa0] sm:$0xff]
      %v2237 = vld [vmem:[%s182 + $0xa8] sm:$0xff]
      %v2238 = vld [vmem:[%s182 + $0xb0] sm:$0xff]
      %v2239 = vld [vmem:[%s182 + $0xb8] sm:$0xff]
      %v2240 = vld [vmem:[%s182 + $0xc0] sm:$0xff]
      %v2241 = vld [vmem:[%s182 + $0xc8] sm:$0xff]
      %v2242 = vld [vmem:[%s182 + $0xd0] sm:$0xff]
      %v2243 = vld [vmem:[%s182 + $0xd8] sm:$0xff]
      %v2244 = vld [vmem:[%s182 + $0xe0] sm:$0xff]
      %v2245 = vld [vmem:[%s182 + $0xe8] sm:$0xff]
      %v2246 = vld [vmem:[%s182 + $0xf0] sm:$0xff]
      %v2247 = vld [vmem:[%s182 + $0xf8] sm:$0xff]
      %v2248 = vld [vmem:[%s182 + $0x100] sm:$0xff]
      %v2249 = vld [vmem:[%s182 + $0x108] sm:$0xff]
      %v2250 = vld [vmem:[%s182 + $0x110] sm:$0xff]
      %v2251 = vld [vmem:[%s182 + $0x118] sm:$0xff]
      %v2252 = vld [vmem:[%s182 + $0x120] sm:$0xff]
      %v2253 = vld [vmem:[%s182 + $0x128] sm:$0xff]
      %v2254 = vld [vmem:[%s182 + $0x130] sm:$0xff]
      %v2255 = vld [vmem:[%s182 + $0x138] sm:$0xff]
      %v2256 = vld [vmem:[%s182 + $0x140] sm:$0xff]
      %v2257 = vld [vmem:[%s182 + $0x148] sm:$0xff]
      %v2258 = vld [vmem:[%s182 + $0x150] sm:$0xff]
      %v2259 = vld [vmem:[%s182 + $0x158] sm:$0xff]
      %v2260 = vld [vmem:[%s182 + $0x160] sm:$0xff]
      %v2261 = vld [vmem:[%s182 + $0x168] sm:$0xff]
      %v2262 = vld [vmem:[%s182 + $0x170] sm:$0xff]
      %v2263 = vld [vmem:[%s182 + $0x178] sm:$0xff]
      %v2264 = vld [vmem:[%s182 + $0x180] sm:$0xff]
      %v2265 = vld [vmem:[%s182 + $0x188] sm:$0xff]
      %v2266 = vld [vmem:[%s182 + $0x190] sm:$0xff]
      %v2267 = vld [vmem:[%s182 + $0x198] sm:$0xff]
      %v2268 = vld [vmem:[%s182 + $0x1a0] sm:$0xff]
      %v2269 = vld [vmem:[%s182 + $0x1a8] sm:$0xff]
      %v2270 = vld [vmem:[%s182 + $0x1b0] sm:$0xff]
      %v2271 = vld [vmem:[%s182 + $0x1b8] sm:$0xff]
      %v2272 = vld [vmem:[%s182 + $0x1c0] sm:$0xff]
      %v2273 = vld [vmem:[%s182 + $0x1c8] sm:$0xff]
      %v2274 = vld [vmem:[%s182 + $0x1d0] sm:$0xff]
      %v2275 = vld [vmem:[%s182 + $0x1d8] sm:$0xff]
      %v2276 = vld [vmem:[%s182 + $0x1e0] sm:$0xff]
      %v2277 = vld [vmem:[%s182 + $0x1e8] sm:$0xff]
      %v2278 = vld [vmem:[%s182 + $0x1f0] sm:$0xff]
      %v2279 = vld [vmem:[%s182 + $0x1f8] sm:$0xff]
      %v2280 = vld [vmem:[%s182 + $0x200] sm:$0xff]
      %v2281 = vld [vmem:[%s182 + $0x208] sm:$0xff]
      %v2282 = vld [vmem:[%s182 + $0x210] sm:$0xff]
      %v2283 = vld [vmem:[%s182 + $0x218] sm:$0xff]
      %v2284 = vld [vmem:[%s182 + $0x220] sm:$0xff]
      %v2285 = vld [vmem:[%s182 + $0x228] sm:$0xff]
      %v2286 = vld [vmem:[%s182 + $0x230] sm:$0xff]
      %v2287 = vld [vmem:[%s182 + $0x238] sm:$0xff]
      %v2288 = vld [vmem:[%s182 + $0x240] sm:$0xff]
      %v2289 = vld [vmem:[%s182 + $0x248] sm:$0xff]
      %v2290 = vld [vmem:[%s182 + $0x250] sm:$0xff]
      %v2291 = vld [vmem:[%s182 + $0x258] sm:$0xff]
      %v2292 = vld [vmem:[%s182 + $0x260] sm:$0xff]
      %v2293 = vld [vmem:[%s182 + $0x268] sm:$0xff]
      %v2294 = vld [vmem:[%s182 + $0x270] sm:$0xff]
      %v2295 = vld [vmem:[%s182 + $0x278] sm:$0xff]
      %v2296 = vld [vmem:[%s182 + $0x280] sm:$0xff]
      %v2297 = vld [vmem:[%s182 + $0x288] sm:$0xff]
      %v2298 = vld [vmem:[%s182 + $0x290] sm:$0xff]
      %v2299 = vld [vmem:[%s182 + $0x298] sm:$0xff]
      %v2300 = vld [vmem:[%s182 + $0x2a0] sm:$0xff]
      %v2301 = vld [vmem:[%s182 + $0x2a8] sm:$0xff]
      %v2302 = vld [vmem:[%s182 + $0x2b0] sm:$0xff]
      %v2303 = vld [vmem:[%s182 + $0x2b8] sm:$0xff]
      %v2304 = vld [vmem:[%s182 + $0x2c0] sm:$0xff]
      %v2305 = vld [vmem:[%s182 + $0x2c8] sm:$0xff]
      %v2306 = vld [vmem:[%s182 + $0x2d0] sm:$0xff]
      %v2307 = vld [vmem:[%s182 + $0x2d8] sm:$0xff]
      %v2308 = vld [vmem:[%s182 + $0x2e0] sm:$0xff]
      %v2309 = vld [vmem:[%s182 + $0x2e8] sm:$0xff]
      %v2310 = vld [vmem:[%s182 + $0x2f0] sm:$0xff]
      %v2311 = vld [vmem:[%s182 + $0x2f8] sm:$0xff]
      %v2312 = vld [vmem:[%s182 + $0x300] sm:$0xff]
      %v2313 = vld [vmem:[%s182 + $0x308] sm:$0xff]
      %v2314 = vld [vmem:[%s182 + $0x310] sm:$0xff]
      %v2315 = vld [vmem:[%s182 + $0x318] sm:$0xff]
      %v2316 = vld [vmem:[%s182 + $0x320] sm:$0xff]
      %v2317 = vld [vmem:[%s182 + $0x328] sm:$0xff]
      %v2318 = vld [vmem:[%s182 + $0x330] sm:$0xff]
      %v2319 = vld [vmem:[%s182 + $0x338] sm:$0xff]
      %v2320 = vld [vmem:[%s182 + $0x340] sm:$0xff]
      %v2321 = vld [vmem:[%s182 + $0x348] sm:$0xff]
      %v2322 = vld [vmem:[%s182 + $0x350] sm:$0xff]
      %v2323 = vld [vmem:[%s182 + $0x358] sm:$0xff]
      %v2324 = vld [vmem:[%s182 + $0x360] sm:$0xff]
      %v2325 = vld [vmem:[%s182 + $0x368] sm:$0xff]
      %v2326 = vld [vmem:[%s182 + $0x370] sm:$0xff]
      %v2327 = vld [vmem:[%s182 + $0x378] sm:$0xff]
      %v2328 = vld [vmem:[%s182 + $0x380] sm:$0xff]
      %v2329 = vld [vmem:[%s182 + $0x388] sm:$0xff]
      %v2330 = vld [vmem:[%s182 + $0x390] sm:$0xff]
      %v2331 = vld [vmem:[%s182 + $0x398] sm:$0xff]
      %v2332 = vld [vmem:[%s182 + $0x3a0] sm:$0xff]
      %v2333 = vld [vmem:[%s182 + $0x3a8] sm:$0xff]
      %v2334 = vld [vmem:[%s182 + $0x3b0] sm:$0xff]
      %v2335 = vld [vmem:[%s182 + $0x3b8] sm:$0xff]
      %v2336 = vld [vmem:[%s182 + $0x3c0] sm:$0xff]
      %v2337 = vld [vmem:[%s182 + $0x3c8] sm:$0xff]
      %v2338 = vld [vmem:[%s182 + $0x3d0] sm:$0xff]
      %v2339 = vld [vmem:[%s182 + $0x3d8] sm:$0xff]
      %v2340 = vld [vmem:[%s182 + $0x3e0] sm:$0xff]
      %v2341 = vld [vmem:[%s182 + $0x3e8] sm:$0xff]
      %v2342 = vld [vmem:[%s182 + $0x3f0] sm:$0xff]
      %v2343 = vld [vmem:[%s182 + $0x3f8] sm:$0xff]
      %v2344 = vadd.f32 %v2216, %v1578
      %v2345 = vadd.f32 %v2217, %v1583
      %v2346 = vadd.f32 %v2218, %v1588
      %v2347 = vadd.f32 %v2219, %v1593
      %v2348 = vadd.f32 %v2220, %v1598
      %v2349 = vadd.f32 %v2221, %v1603
      %v2350 = vadd.f32 %v2222, %v1608
      %v2351 = vadd.f32 %v2223, %v1613
      %v2352 = vadd.f32 %v2224, %v1618
      %v2353 = vadd.f32 %v2225, %v1623
      %v2354 = vadd.f32 %v2226, %v1628
      %v2355 = vadd.f32 %v2227, %v1633
      %v2356 = vadd.f32 %v2228, %v1638
      %v2357 = vadd.f32 %v2229, %v1643
      %v2358 = vadd.f32 %v2230, %v1648
      %v2359 = vadd.f32 %v2231, %v1653
      %v2360 = vadd.f32 %v2232, %v1658
      %v2361 = vadd.f32 %v2233, %v1663
      %v2362 = vadd.f32 %v2234, %v1668
      %v2363 = vadd.f32 %v2235, %v1673
      %v2364 = vadd.f32 %v2236, %v1678
      %v2365 = vadd.f32 %v2237, %v1683
      %v2366 = vadd.f32 %v2238, %v1688
      %v2367 = vadd.f32 %v2239, %v1693
      %v2368 = vadd.f32 %v2240, %v1698
      %v2369 = vadd.f32 %v2241, %v1703
      %v2370 = vadd.f32 %v2242, %v1708
      %v2371 = vadd.f32 %v2243, %v1713
      %v2372 = vadd.f32 %v2244, %v1718
      %v2373 = vadd.f32 %v2245, %v1723
      %v2374 = vadd.f32 %v2246, %v1728
      %v2375 = vadd.f32 %v2247, %v1733
      %v2376 = vadd.f32 %v2248, %v1738
      %v2377 = vadd.f32 %v2249, %v1743
      %v2378 = vadd.f32 %v2250, %v1748
      %v2379 = vadd.f32 %v2251, %v1753
      %v2380 = vadd.f32 %v2252, %v1758
      %v2381 = vadd.f32 %v2253, %v1763
      %v2382 = vadd.f32 %v2254, %v1768
      %v2383 = vadd.f32 %v2255, %v1773
      %v2384 = vadd.f32 %v2256, %v1778
      %v2385 = vadd.f32 %v2257, %v1783
      %v2386 = vadd.f32 %v2258, %v1788
      %v2387 = vadd.f32 %v2259, %v1793
      %v2388 = vadd.f32 %v2260, %v1798
      %v2389 = vadd.f32 %v2261, %v1803
      %v2390 = vadd.f32 %v2262, %v1808
      %v2391 = vadd.f32 %v2263, %v1813
      %v2392 = vadd.f32 %v2264, %v1818
      %v2393 = vadd.f32 %v2265, %v1823
      %v2394 = vadd.f32 %v2266, %v1828
      %v2395 = vadd.f32 %v2267, %v1833
      %v2396 = vadd.f32 %v2268, %v1838
      %v2397 = vadd.f32 %v2269, %v1843
      %v2398 = vadd.f32 %v2270, %v1848
      %v2399 = vadd.f32 %v2271, %v1853
      %v2400 = vadd.f32 %v2272, %v1858
      %v2401 = vadd.f32 %v2273, %v1863
      %v2402 = vadd.f32 %v2274, %v1868
      %v2403 = vadd.f32 %v2275, %v1873
      %v2404 = vadd.f32 %v2276, %v1878
      %v2405 = vadd.f32 %v2277, %v1883
      %v2406 = vadd.f32 %v2278, %v1888
      %v2407 = vadd.f32 %v2279, %v1893
      %v2408 = vadd.f32 %v2280, %v1898
      %v2409 = vadd.f32 %v2281, %v1903
      %v2410 = vadd.f32 %v2282, %v1908
      %v2411 = vadd.f32 %v2283, %v1913
      %v2412 = vadd.f32 %v2284, %v1918
      %v2413 = vadd.f32 %v2285, %v1923
      %v2414 = vadd.f32 %v2286, %v1928
      %v2415 = vadd.f32 %v2287, %v1933
      %v2416 = vadd.f32 %v2288, %v1938
      %v2417 = vadd.f32 %v2289, %v1943
      %v2418 = vadd.f32 %v2290, %v1948
      %v2419 = vadd.f32 %v2291, %v1953
      %v2420 = vadd.f32 %v2292, %v1958
      %v2421 = vadd.f32 %v2293, %v1963
      %v2422 = vadd.f32 %v2294, %v1968
      %v2423 = vadd.f32 %v2295, %v1973
      %v2424 = vadd.f32 %v2296, %v1978
      %v2425 = vadd.f32 %v2297, %v1983
      %v2426 = vadd.f32 %v2298, %v1988
      %v2427 = vadd.f32 %v2299, %v1993
      %v2428 = vadd.f32 %v2300, %v1998
      %v2429 = vadd.f32 %v2301, %v2003
      %v2430 = vadd.f32 %v2302, %v2008
      %v2431 = vadd.f32 %v2303, %v2013
      %v2432 = vadd.f32 %v2304, %v2018
      %v2433 = vadd.f32 %v2305, %v2023
      %v2434 = vadd.f32 %v2306, %v2028
      %v2435 = vadd.f32 %v2307, %v2033
      %v2436 = vadd.f32 %v2308, %v2038
      %v2437 = vadd.f32 %v2309, %v2043
      %v2438 = vadd.f32 %v2310, %v2048
      %v2439 = vadd.f32 %v2311, %v2053
      %v2440 = vadd.f32 %v2312, %v2058
      %v2441 = vadd.f32 %v2313, %v2063
      %v2442 = vadd.f32 %v2314, %v2068
      %v2443 = vadd.f32 %v2315, %v2073
      %v2444 = vadd.f32 %v2316, %v2078
      %v2445 = vadd.f32 %v2317, %v2083
      %v2446 = vadd.f32 %v2318, %v2088
      %v2447 = vadd.f32 %v2319, %v2093
      %v2448 = vadd.f32 %v2320, %v2098
      %v2449 = vadd.f32 %v2321, %v2103
      %v2450 = vadd.f32 %v2322, %v2108
      %v2451 = vadd.f32 %v2323, %v2113
      %v2452 = vadd.f32 %v2324, %v2118
      %v2453 = vadd.f32 %v2325, %v2123
      %v2454 = vadd.f32 %v2326, %v2128
      %v2455 = vadd.f32 %v2327, %v2133
      %v2456 = vadd.f32 %v2328, %v2138
      %v2457 = vadd.f32 %v2329, %v2143
      %v2458 = vadd.f32 %v2330, %v2148
      %v2459 = vadd.f32 %v2331, %v2153
      %v2460 = vadd.f32 %v2332, %v2158
      %v2461 = vadd.f32 %v2333, %v2163
      %v2462 = vadd.f32 %v2334, %v2168
      %v2463 = vadd.f32 %v2335, %v2173
      %v2464 = vadd.f32 %v2336, %v2178
      %v2465 = vadd.f32 %v2337, %v2183
      %v2466 = vadd.f32 %v2338, %v2188
      %v2467 = vadd.f32 %v2339, %v2193
      %v2468 = vadd.f32 %v2340, %v2198
      %v2469 = vadd.f32 %v2341, %v2203
      %v2470 = vadd.f32 %v2342, %v2208
      %v2471 = vadd.f32 %v2343, %v2213
      %vm2472 = vcmask 261120
      %2473 = vst.msk [vmem:[%s194] sm:$0xff] %vm2472, %v2344
      %2474 = vst.msk [vmem:[%s194 + $0x8] sm:$0xff] %vm2472, %v2345
      %2475 = vst.msk [vmem:[%s194 + $0x10] sm:$0xff] %vm2472, %v2346
      %2476 = vst.msk [vmem:[%s194 + $0x18] sm:$0xff] %vm2472, %v2347
      %2477 = vst.msk [vmem:[%s194 + $0x20] sm:$0xff] %vm2472, %v2348
      %2478 = vst.msk [vmem:[%s194 + $0x28] sm:$0xff] %vm2472, %v2349
      %2479 = vst.msk [vmem:[%s194 + $0x30] sm:$0xff] %vm2472, %v2350
      %2480 = vst.msk [vmem:[%s194 + $0x38] sm:$0xff] %vm2472, %v2351
      %2481 = vst.msk [vmem:[%s194 + $0x40] sm:$0xff] %vm2472, %v2352
      %2482 = vst.msk [vmem:[%s194 + $0x48] sm:$0xff] %vm2472, %v2353
      %2483 = vst.msk [vmem:[%s194 + $0x50] sm:$0xff] %vm2472, %v2354
      %2484 = vst.msk [vmem:[%s194 + $0x58] sm:$0xff] %vm2472, %v2355
      %2485 = vst.msk [vmem:[%s194 + $0x60] sm:$0xff] %vm2472, %v2356
      %2486 = vst.msk [vmem:[%s194 + $0x68] sm:$0xff] %vm2472, %v2357
      %2487 = vst.msk [vmem:[%s194 + $0x70] sm:$0xff] %vm2472, %v2358
      %2488 = vst.msk [vmem:[%s194 + $0x78] sm:$0xff] %vm2472, %v2359
      %2489 = vst.msk [vmem:[%s194 + $0x80] sm:$0xff] %vm2472, %v2360
      %2490 = vst.msk [vmem:[%s194 + $0x88] sm:$0xff] %vm2472, %v2361
      %2491 = vst.msk [vmem:[%s194 + $0x90] sm:$0xff] %vm2472, %v2362
      %2492 = vst.msk [vmem:[%s194 + $0x98] sm:$0xff] %vm2472, %v2363
      %2493 = vst.msk [vmem:[%s194 + $0xa0] sm:$0xff] %vm2472, %v2364
      %2494 = vst.msk [vmem:[%s194 + $0xa8] sm:$0xff] %vm2472, %v2365
      %2495 = vst.msk [vmem:[%s194 + $0xb0] sm:$0xff] %vm2472, %v2366
      %2496 = vst.msk [vmem:[%s194 + $0xb8] sm:$0xff] %vm2472, %v2367
      %2497 = vst.msk [vmem:[%s194 + $0xc0] sm:$0xff] %vm2472, %v2368
      %2498 = vst.msk [vmem:[%s194 + $0xc8] sm:$0xff] %vm2472, %v2369
      %2499 = vst.msk [vmem:[%s194 + $0xd0] sm:$0xff] %vm2472, %v2370
      %2500 = vst.msk [vmem:[%s194 + $0xd8] sm:$0xff] %vm2472, %v2371
      %2501 = vst.msk [vmem:[%s194 + $0xe0] sm:$0xff] %vm2472, %v2372
      %2502 = vst.msk [vmem:[%s194 + $0xe8] sm:$0xff] %vm2472, %v2373
      %2503 = vst.msk [vmem:[%s194 + $0xf0] sm:$0xff] %vm2472, %v2374
      %2504 = vst.msk [vmem:[%s194 + $0xf8] sm:$0xff] %vm2472, %v2375
      %2505 = vst.msk [vmem:[%s194 + $0x100] sm:$0xff] %vm2472, %v2376
      %2506 = vst.msk [vmem:[%s194 + $0x108] sm:$0xff] %vm2472, %v2377
      %2507 = vst.msk [vmem:[%s194 + $0x110] sm:$0xff] %vm2472, %v2378
      %2508 = vst.msk [vmem:[%s194 + $0x118] sm:$0xff] %vm2472, %v2379
      %2509 = vst.msk [vmem:[%s194 + $0x120] sm:$0xff] %vm2472, %v2380
      %2510 = vst.msk [vmem:[%s194 + $0x128] sm:$0xff] %vm2472, %v2381
      %2511 = vst.msk [vmem:[%s194 + $0x130] sm:$0xff] %vm2472, %v2382
      %2512 = vst.msk [vmem:[%s194 + $0x138] sm:$0xff] %vm2472, %v2383
      %2513 = vst.msk [vmem:[%s194 + $0x140] sm:$0xff] %vm2472, %v2384
      %2514 = vst.msk [vmem:[%s194 + $0x148] sm:$0xff] %vm2472, %v2385
      %2515 = vst.msk [vmem:[%s194 + $0x150] sm:$0xff] %vm2472, %v2386
      %2516 = vst.msk [vmem:[%s194 + $0x158] sm:$0xff] %vm2472, %v2387
      %2517 = vst.msk [vmem:[%s194 + $0x160] sm:$0xff] %vm2472, %v2388
      %2518 = vst.msk [vmem:[%s194 + $0x168] sm:$0xff] %vm2472, %v2389
      %2519 = vst.msk [vmem:[%s194 + $0x170] sm:$0xff] %vm2472, %v2390
      %2520 = vst.msk [vmem:[%s194 + $0x178] sm:$0xff] %vm2472, %v2391
      %2521 = vst.msk [vmem:[%s194 + $0x180] sm:$0xff] %vm2472, %v2392
      %2522 = vst.msk [vmem:[%s194 + $0x188] sm:$0xff] %vm2472, %v2393
      %2523 = vst.msk [vmem:[%s194 + $0x190] sm:$0xff] %vm2472, %v2394
      %2524 = vst.msk [vmem:[%s194 + $0x198] sm:$0xff] %vm2472, %v2395
      %2525 = vst.msk [vmem:[%s194 + $0x1a0] sm:$0xff] %vm2472, %v2396
      %2526 = vst.msk [vmem:[%s194 + $0x1a8] sm:$0xff] %vm2472, %v2397
      %2527 = vst.msk [vmem:[%s194 + $0x1b0] sm:$0xff] %vm2472, %v2398
      %2528 = vst.msk [vmem:[%s194 + $0x1b8] sm:$0xff] %vm2472, %v2399
      %2529 = vst.msk [vmem:[%s194 + $0x1c0] sm:$0xff] %vm2472, %v2400
      %2530 = vst.msk [vmem:[%s194 + $0x1c8] sm:$0xff] %vm2472, %v2401
      %2531 = vst.msk [vmem:[%s194 + $0x1d0] sm:$0xff] %vm2472, %v2402
      %2532 = vst.msk [vmem:[%s194 + $0x1d8] sm:$0xff] %vm2472, %v2403
      %2533 = vst.msk [vmem:[%s194 + $0x1e0] sm:$0xff] %vm2472, %v2404
      %2534 = vst.msk [vmem:[%s194 + $0x1e8] sm:$0xff] %vm2472, %v2405
      %2535 = vst.msk [vmem:[%s194 + $0x1f0] sm:$0xff] %vm2472, %v2406
      %2536 = vst.msk [vmem:[%s194 + $0x1f8] sm:$0xff] %vm2472, %v2407
      %2537 = vst.msk [vmem:[%s194 + $0x200] sm:$0xff] %vm2472, %v2408
      %2538 = vst.msk [vmem:[%s194 + $0x208] sm:$0xff] %vm2472, %v2409
      %2539 = vst.msk [vmem:[%s194 + $0x210] sm:$0xff] %vm2472, %v2410
      %2540 = vst.msk [vmem:[%s194 + $0x218] sm:$0xff] %vm2472, %v2411
      %2541 = vst.msk [vmem:[%s194 + $0x220] sm:$0xff] %vm2472, %v2412
      %2542 = vst.msk [vmem:[%s194 + $0x228] sm:$0xff] %vm2472, %v2413
      %2543 = vst.msk [vmem:[%s194 + $0x230] sm:$0xff] %vm2472, %v2414
      %2544 = vst.msk [vmem:[%s194 + $0x238] sm:$0xff] %vm2472, %v2415
      %2545 = vst.msk [vmem:[%s194 + $0x240] sm:$0xff] %vm2472, %v2416
      %2546 = vst.msk [vmem:[%s194 + $0x248] sm:$0xff] %vm2472, %v2417
      %2547 = vst.msk [vmem:[%s194 + $0x250] sm:$0xff] %vm2472, %v2418
      %2548 = vst.msk [vmem:[%s194 + $0x258] sm:$0xff] %vm2472, %v2419
      %2549 = vst.msk [vmem:[%s194 + $0x260] sm:$0xff] %vm2472, %v2420
      %2550 = vst.msk [vmem:[%s194 + $0x268] sm:$0xff] %vm2472, %v2421
      %2551 = vst.msk [vmem:[%s194 + $0x270] sm:$0xff] %vm2472, %v2422
      %2552 = vst.msk [vmem:[%s194 + $0x278] sm:$0xff] %vm2472, %v2423
      %2553 = vst.msk [vmem:[%s194 + $0x280] sm:$0xff] %vm2472, %v2424
      %2554 = vst.msk [vmem:[%s194 + $0x288] sm:$0xff] %vm2472, %v2425
      %2555 = vst.msk [vmem:[%s194 + $0x290] sm:$0xff] %vm2472, %v2426
      %2556 = vst.msk [vmem:[%s194 + $0x298] sm:$0xff] %vm2472, %v2427
      %2557 = vst.msk [vmem:[%s194 + $0x2a0] sm:$0xff] %vm2472, %v2428
      %2558 = vst.msk [vmem:[%s194 + $0x2a8] sm:$0xff] %vm2472, %v2429
      %2559 = vst.msk [vmem:[%s194 + $0x2b0] sm:$0xff] %vm2472, %v2430
      %2560 = vst.msk [vmem:[%s194 + $0x2b8] sm:$0xff] %vm2472, %v2431
      %2561 = vst.msk [vmem:[%s194 + $0x2c0] sm:$0xff] %vm2472, %v2432
      %2562 = vst.msk [vmem:[%s194 + $0x2c8] sm:$0xff] %vm2472, %v2433
      %2563 = vst.msk [vmem:[%s194 + $0x2d0] sm:$0xff] %vm2472, %v2434
      %2564 = vst.msk [vmem:[%s194 + $0x2d8] sm:$0xff] %vm2472, %v2435
      %2565 = vst.msk [vmem:[%s194 + $0x2e0] sm:$0xff] %vm2472, %v2436
      %2566 = vst.msk [vmem:[%s194 + $0x2e8] sm:$0xff] %vm2472, %v2437
      %2567 = vst.msk [vmem:[%s194 + $0x2f0] sm:$0xff] %vm2472, %v2438
      %2568 = vst.msk [vmem:[%s194 + $0x2f8] sm:$0xff] %vm2472, %v2439
      %2569 = vst.msk [vmem:[%s194 + $0x300] sm:$0xff] %vm2472, %v2440
      %2570 = vst.msk [vmem:[%s194 + $0x308] sm:$0xff] %vm2472, %v2441
      %2571 = vst.msk [vmem:[%s194 + $0x310] sm:$0xff] %vm2472, %v2442
      %2572 = vst.msk [vmem:[%s194 + $0x318] sm:$0xff] %vm2472, %v2443
      %2573 = vst.msk [vmem:[%s194 + $0x320] sm:$0xff] %vm2472, %v2444
      %2574 = vst.msk [vmem:[%s194 + $0x328] sm:$0xff] %vm2472, %v2445
      %2575 = vst.msk [vmem:[%s194 + $0x330] sm:$0xff] %vm2472, %v2446
      %2576 = vst.msk [vmem:[%s194 + $0x338] sm:$0xff] %vm2472, %v2447
      %2577 = vst.msk [vmem:[%s194 + $0x340] sm:$0xff] %vm2472, %v2448
      %2578 = vst.msk [vmem:[%s194 + $0x348] sm:$0xff] %vm2472, %v2449
      %2579 = vst.msk [vmem:[%s194 + $0x350] sm:$0xff] %vm2472, %v2450
      %2580 = vst.msk [vmem:[%s194 + $0x358] sm:$0xff] %vm2472, %v2451
      %2581 = vst.msk [vmem:[%s194 + $0x360] sm:$0xff] %vm2472, %v2452
      %2582 = vst.msk [vmem:[%s194 + $0x368] sm:$0xff] %vm2472, %v2453
      %2583 = vst.msk [vmem:[%s194 + $0x370] sm:$0xff] %vm2472, %v2454
      %2584 = vst.msk [vmem:[%s194 + $0x378] sm:$0xff] %vm2472, %v2455
      %2585 = vst.msk [vmem:[%s194 + $0x380] sm:$0xff] %vm2472, %v2456
      %2586 = vst.msk [vmem:[%s194 + $0x388] sm:$0xff] %vm2472, %v2457
      %2587 = vst.msk [vmem:[%s194 + $0x390] sm:$0xff] %vm2472, %v2458
      %2588 = vst.msk [vmem:[%s194 + $0x398] sm:$0xff] %vm2472, %v2459
      %2589 = vst.msk [vmem:[%s194 + $0x3a0] sm:$0xff] %vm2472, %v2460
      %2590 = vst.msk [vmem:[%s194 + $0x3a8] sm:$0xff] %vm2472, %v2461
      %2591 = vst.msk [vmem:[%s194 + $0x3b0] sm:$0xff] %vm2472, %v2462
      %2592 = vst.msk [vmem:[%s194 + $0x3b8] sm:$0xff] %vm2472, %v2463
      %2593 = vst.msk [vmem:[%s194 + $0x3c0] sm:$0xff] %vm2472, %v2464
      %2594 = vst.msk [vmem:[%s194 + $0x3c8] sm:$0xff] %vm2472, %v2465
      %2595 = vst.msk [vmem:[%s194 + $0x3d0] sm:$0xff] %vm2472, %v2466
      %2596 = vst.msk [vmem:[%s194 + $0x3d8] sm:$0xff] %vm2472, %v2467
      %2597 = vst.msk [vmem:[%s194 + $0x3e0] sm:$0xff] %vm2472, %v2468
      %2598 = vst.msk [vmem:[%s194 + $0x3e8] sm:$0xff] %vm2472, %v2469
      %2599 = vst.msk [vmem:[%s194 + $0x3f0] sm:$0xff] %vm2472, %v2470
      %2600 = vst.msk [vmem:[%s194 + $0x3f8] sm:$0xff] %vm2472, %v2471
      %s2601 = smul.u32 128, %s14
      %p2602 = scmp.lt.s32.totalorder %s2601, 255
      %s2603 = scalar_select %p2602, %s2601, 255
      %s2604 = smul.addr %s2603, 8
      %s2605 = scalar_lea.vmem %s3, %s2604
      // Predicated region
      $region33: #{rte_forward.1} parent=31 // pred_check
        %p2606 = pneg %p105
      $region34: #{rte_forward.1} parent=31 // pred_check_branch
        %2608 = sbr.rel (%p2606) target = $region36
      $region35: #{rte_forward.1} parent=31 // pred_region
        %s2609 = smul.u32 128, %s14
      $region36: #{rte_forward.1} parent=31 // pred_fallthru
        _
    $region32: #{rte_forward.1} parent=5 // pred_fallthru
      _
    %p2610 = scmp.le.s32.totalorder 2, %s9
    // Predicated region
    $region37: #{rte_forward.1} parent=5 // pred_check
      %p2611 = pneg %p2610
    $region38: #{rte_forward.1} parent=5 // pred_check_branch
      %2613 = sbr.rel (%p2611) target = $region40
    $region39: #{rte_forward.1} parent=5 // pred_region
      %s2614 = ssub.s32 %s9, 2
      // Predicated region
      $region41: #{rte_forward.1} parent=39 // pred_check
        %p2615 = pneg %p111
      $region42: #{rte_forward.1} parent=39 // pred_check_branch
        %2617 = sbr.rel (%p2615) target = $region44
      $region43: #{rte_forward.1} parent=39 // pred_region
        %s2618 = smul.u32 128, %s15
        %p2619 = scmp.lt.s32.totalorder %s2618, 255
        %s2620 = scalar_select %p2619, %s2618, 255
        %s2621 = smul.addr %s2620, 8
        %s2622 = scalar_lea.vmem %s3, %s2621
      $region44: #{rte_forward.1} parent=39 // pred_fallthru
        _
    $region40: #{rte_forward.1} parent=5 // pred_fallthru
      _
  $region6: #{rte_forward.1} parent=0 // loop_footer
    %s13 = sadd.s32 1, %s9
  $region7: #{rte_forward.1} parent=0 // loop_footer_branch
    %8 = sbr.rel target = $region3
  $region8: #{rte_forward.1} parent=0 // loop_exit
    _

</llo_original>
